<compile_context>
chip_gen: v5e
topology: v5e:2x2
jax: 0.10.0
libtpu: 0.0.40
codegen_flags: <defaults>
</compile_context>

<pallas_src>
import functools

import jax
import jax.numpy as jnp
import numpy as np
from jax.experimental import pallas as pl
from jax.experimental.pallas import tpu as pltpu

# ----------------------------- config -----------------------------
CONFIG = dict(
    hidden_size=32,
    ffn_hidden_size=64,
    num_heads=4,
    num_kv_heads=2,
    rope_dim=4,          # < head_dim to exercise the partial-RoPE path
    rope_base=10000.0,
    dropout_rate=0.0,
    layer_norm_eps=1e-6,
)
BATCH = 2
SEQ = 8


# ----------------------------- kernel -----------------------------
def _block_kernel(x_ref, wan_ref, wfn_ref, wq_ref, wqr_ref, wk_ref, wkr_ref,
                  wv_ref, wo_ref, wg_ref, wvl_ref, wup_ref, cos_ref, sin_ref,
                  o_ref, *, num_heads, num_kv_heads, head_dim, rope_dim, eps):
    H, KV, hd, rd = num_heads, num_kv_heads, head_dim, rope_dim
    rep = H // KV
    bf16, f32 = jnp.bfloat16, jnp.float32

    x = x_ref[...]                                  # (T, C) f32, one batch row
    T, C = x.shape

    def rmsnorm(v, w):
        n = jnp.sqrt(jnp.mean(v * v, axis=-1, keepdims=True) + eps)
        return w * (v / n)

    def mm(a, b):                                   # bf16 MXU, f32 accumulate
        return jnp.dot(a, b, preferred_element_type=f32)

    # ---------------- attention ----------------
    xn = rmsnorm(x, wan_ref[...]).astype(bf16)

    # single flat projections: full MXU output width, contraction depth C
    q_flat = mm(xn, wq_ref[...])                    # (T, H*hd)   f32
    qr_flat = mm(xn, wqr_ref[...])                  # (T, H*rd)   rotate_half(q)
    k_flat = mm(xn, wk_ref[...])                    # (T, KV*hd)
    kr_flat = mm(xn, wkr_ref[...])                  # (T, KV*rd)
    v_flat = mm(xn, wv_ref[...])                    # (T, KV*hd)

    cos = cos_ref[...]                              # (T, rd) f32
    sin = sin_ref[...]

    def apply_rope(full, rot):                      # (T, hd), (T, rd) -> (T, hd)
        rotated = full[:, :rd] * cos + rot * sin
        if rd == hd:
            return rotated
        return jnp.concatenate([rotated, full[:, rd:]], axis=1)

    scale = hd ** -0.5
    dn_qkt = (((1,), (1,)), ((), ()))               # (M,hd) x (N,hd) -> (M,N)

    o_heads = []
    for g in range(KV):                             # one score block per KV head
        k_g = apply_rope(k_flat[:, g * hd:(g + 1) * hd],
                         kr_flat[:, g * rd:(g + 1) * rd]).astype(bf16)
        v_g = v_flat[:, g * hd:(g + 1) * hd].astype(bf16)

        # group the rep query heads sharing this KV head into one row block so
        # K/V are pushed through the MXU once per group (GQA without
        # materializing repeated K/V).
        q_rows = []
        for r in range(rep):
            h = g * rep + r
            q_rows.append(apply_rope(q_flat[:, h * hd:(h + 1) * hd],
                                     qr_flat[:, h * rd:(h + 1) * rd]))
        q_g = jnp.concatenate(q_rows, axis=0).astype(bf16)       # (rep*T, hd)

        s = jax.lax.dot_general(q_g, k_g, dn_qkt,
                                preferred_element_type=f32) * scale
        s = s - jnp.max(s, axis=-1, keepdims=True)
        p = jnp.exp(s)
        p = p / jnp.sum(p, axis=-1, keepdims=True)               # exact softmax
        o_g = mm(p.astype(bf16), v_g)                            # (rep*T, hd) f32
        for r in range(rep):                                     # head order h = g*rep + r
            o_heads.append(o_g[r * T:(r + 1) * T, :])
    o_cat = jnp.concatenate(o_heads, axis=1).astype(bf16)        # (T, H*hd)

    # single full-depth output projection
    x1 = x + mm(o_cat, wo_ref[...])                              # (T, C) f32

    # ---------------- SwiGLU FFN ----------------
    xn2 = rmsnorm(x1, wfn_ref[...]).astype(bf16)
    a = mm(xn2, wg_ref[...])                                     # (T, F) f32
    b = mm(xn2, wvl_ref[...])                                    # (T, F) f32
    gated = (a / (1.0 + jnp.exp(-a)) * b).astype(bf16)           # silu(a) * b
    ff = mm(gated, wup_ref[...])                                 # (T, C) f32

    o_ref[...] = (x1 + ff).astype(o_ref.dtype)


# ----------------------------- host glue -----------------------------
def transformer_block(x, params, config, pos_offset=0):
    B, T, C = x.shape
    H = config["num_heads"]
    KV = config["num_kv_heads"]
    hd = C // H
    F = config["ffn_hidden_size"]
    eps = config["layer_norm_eps"]
    rd = min(config["rope_dim"], hd)
    f32, bf16 = jnp.float32, jnp.bfloat16

    # fold torch's rotate_half into rd-column projection weights.  P is a
    # signed permutation, so w[:, :rd] @ P is an EXACT column shuffle + flip.
    d2 = rd // 2
    P = np.zeros((rd, rd), np.float32)
    for j in range(d2):
        P[2 * j + 1, j] = -1.0        # out[:, j]      = -x[:, 2j+1]
        P[2 * j, d2 + j] = 1.0        # out[:, d2 + j] =  x[:, 2j]
    P = jnp.asarray(P)

    wq, wk, wv, wo = params["wq"], params["wk"], params["wv"], params["wo"]
    wq_rot = jnp.concatenate([wq[:, h * hd:h * hd + rd] @ P for h in range(H)], axis=1)
    wk_rot = jnp.concatenate([wk[:, g * hd:g * hd + rd] @ P for g in range(KV)], axis=1)
    w_gate = params["w_in"][:, :F]
    w_val = params["w_in"][:, F:]

    # RoPE tables, (T, rd), passed once (no tile over batch / heads).
    inv_freq = 1.0 / (config["rope_base"] **
                      (np.arange(0, rd, 2, dtype=np.float32) / rd))
    pos = np.arange(pos_offset, pos_offset + T, dtype=np.float32)
    freqs = np.einsum("i,j->ij", pos, inv_freq)                  # (T, rd/2)
    emb = jnp.asarray(np.concatenate([freqs, freqs], -1)) * params["rope_scale"]
    cos, sin = jnp.cos(emb), jnp.sin(emb)

    operands = (
        x.astype(f32),
        params["w_attn_norm"].reshape(1, C).astype(f32),
        params["w_ffn_norm"].reshape(1, C).astype(f32),
        wq.astype(bf16), wq_rot.astype(bf16),
        wk.astype(bf16), wk_rot.astype(bf16), wv.astype(bf16),
        wo.astype(bf16),
        w_gate.astype(bf16), w_val.astype(bf16), params["w_up"].astype(bf16),
        cos.astype(f32), sin.astype(f32),
    )

    kern = functools.partial(_block_kernel, num_heads=H, num_kv_heads=KV,
                             head_dim=hd, rope_dim=rd, eps=eps)

    def full(shape):
        return pl.BlockSpec(shape, lambda b: (0,) * len(shape))

    in_specs = [
        pl.BlockSpec((None, T, C), lambda b: (b, 0, 0)),   # x: one batch / program
        full((1, C)), full((1, C)),                        # norm weights
        full((C, H * hd)), full((C, H * rd)),              # wq, wq_rot
        full((C, KV * hd)), full((C, KV * rd)),            # wk, wk_rot
        full((C, KV * hd)),                                 # wv
        full((H * hd, C)),                                  # wo
        full((C, F)), full((C, F)), full((F, C)),           # gate / val / up
        full((T, rd)), full((T, rd)),                       # cos, sin
    ]
    out_specs = pl.BlockSpec((None, T, C), lambda b: (b, 0, 0))

    flops = B * (2 * T * C * (H * hd + H * rd + 2 * KV * hd + KV * rd)  # q(+rot)/k(+rot)/v
                 + 2 * H * T * T * hd * 2                               # scores + p@v
                 + 2 * T * (H * hd) * C                                 # output proj
                 + 2 * T * C * F * 2 + 2 * T * F * C)                   # SwiGLU FFN
    transcendentals = B * (H * T * T + T * F)
    bytes_accessed = (sum(int(np.prod(a.shape)) * a.dtype.itemsize for a in operands)
                      + B * T * C * 4)

    out = pl.pallas_call(
        kern,
        out_shape=jax.ShapeDtypeStruct((B, T, C), f32),
        grid=(B,),
        in_specs=in_specs,
        out_specs=out_specs,
        compiler_params=pltpu.CompilerParams(
            dimension_semantics=("parallel",),
            vmem_limit_bytes=32 * 1024 * 1024),
        cost_estimate=pl.CostEstimate(flops=flops,
                                      transcendentals=transcendentals,
                                      bytes_accessed=bytes_accessed),
    )(*operands)
    return out


# ----------------------------- pure-JAX reference -----------------------------
def _ref_forward(x, params, config, pos_offset=0, matmul_dtype=jnp.float32):
    """Reference matching torch semantics.  matmul_dtype=f32 -> exact f32 ref;
    matmul_dtype=bf16 -> same mixed-precision recipe as the kernel."""
    B, T, C = x.shape
    H = config["num_heads"]
    KV = config["num_kv_heads"]
    hd = C // H
    F = config["ffn_hidden_size"]
    eps = config["layer_norm_eps"]
    rd = min(config["rope_dim"], hd)
    dt = matmul_dtype

    def mm(a, b):
        return jnp.matmul(a.astype(dt), b.astype(dt),
                          preferred_element_type=jnp.float32)

    def rmsnorm(v, w):
        n = jnp.sqrt(jnp.mean(v * v, -1, keepdims=True) + eps)
        return w * (v / n)

    xn = rmsnorm(x, params["w_attn_norm"])
    q = mm(xn, params["wq"]).reshape(B, T, H, hd).transpose(0, 2, 1, 3)
    k = mm(xn, params["wk"]).reshape(B, T, KV, hd).transpose(0, 2, 1, 3)
    v = mm(xn, params["wv"]).reshape(B, T, KV, hd).transpose(0, 2, 1, 3)
    if KV < H:
        rep = H // KV
        k = jnp.repeat(k, rep, axis=1)
        v = jnp.repeat(v, rep, axis=1)

    inv_freq = 1.0 / (config["rope_base"] **
                      (jnp.arange(0, rd, 2, dtype=jnp.float32) / rd))
    pos = jnp.arange(pos_offset, pos_offset + T, dtype=jnp.float32)
    freqs = pos[:, None] * inv_freq[None, :]
    emb = jnp.concatenate([freqs, freqs], -1) * params["rope_scale"]
    cos = jnp.cos(emb)[None, None]
    sin = jnp.sin(emb)[None, None]

    def rot(t):
        return jnp.concatenate([-t[..., 1::2], t[..., ::2]], -1)

    q1, q2 = q[..., :rd], q[..., rd:]
    k1, k2 = k[..., :rd], k[..., rd:]
    q = jnp.concatenate([q1 * cos + rot(q1) * sin, q2], -1)
    k = jnp.concatenate([k1 * cos + rot(k1) * sin, k2], -1)

    s = jnp.einsum("bhqd,bhkd->bhqk", q.astype(dt), k.astype(dt),
                   preferred_element_type=jnp.float32) * (hd ** -0.5)
    p = jax.nn.softmax(s, axis=-1)
    o = jnp.einsum("bhqk,bhkd->bhqd", p.astype(dt), v.astype(dt),
                   preferred_element_type=jnp.float32)
    o = o.transpose(0, 2, 1, 3).reshape(B, T, H * hd)
    x1 = x + mm(o, params["wo"])

    xn2 = rmsnorm(x1, params["w_ffn_norm"])
    hp = mm(xn2, params["w_in"])
    a, b = hp[..., :F], hp[..., F:]
    ff = mm(jax.nn.silu(a) * b, params["w_up"])
    return x1 + ff


# ----------------------------- main -----------------------------
if __name__ == "__main__":
    cfg = CONFIG
    C = cfg["hidden_size"]
    H = cfg["num_heads"]
    KV = cfg["num_kv_heads"]
    hd = C // H
    F = cfg["ffn_hidden_size"]

    key = jax.random.PRNGKey(0)
    ks = jax.random.split(key, 10)
    init = lambda k, shape: 0.02 * jax.random.normal(k, shape, jnp.float32)

    params = {
        "w_attn_norm": 1.0 + 0.1 * jax.random.normal(ks[0], (C,), jnp.float32),
        "w_ffn_norm":  1.0 + 0.1 * jax.random.normal(ks[1], (C,), jnp.float32),
        "wq":  init(ks[2], (C, H * hd)),
        "wk":  init(ks[3], (C, KV * hd)),
        "wv":  init(ks[4], (C, KV * hd)),
        "wo":  init(ks[5], (H * hd, C)),
        "w_in": init(ks[6], (C, 2 * F)),
        "w_up": init(ks[7], (F, C)),
        "rope_scale": jnp.ones((), jnp.float32),
    }

    x = jax.random.normal(ks[8], (BATCH, SEQ, C), jnp.float32)

    out = jax.block_until_ready(transformer_block(x, params, cfg))
    assert out.shape == (BATCH, SEQ, C)

    # strict check vs. a reference using the same bf16-matmul / f32-acc recipe
    ref_mixed = jax.block_until_ready(
        _ref_forward(x, params, cfg, matmul_dtype=jnp.bfloat16))
    assert jnp.allclose(out, ref_mixed, atol=1e-3, rtol=1e-3), (
        f"mixed-precision mismatch, max err {jnp.max(jnp.abs(out - ref_mixed))}")

    # loose check vs. the pure-f32 (torch-semantics) reference; the gap is the
    # bf16 matmul rounding budget.
    ref_f32 = jax.block_until_ready(
        _ref_forward(x, params, cfg, matmul_dtype=jnp.float32))
    assert jnp.allclose(out, ref_f32, atol=2e-2, rtol=2e-2), (
        f"f32 reference mismatch, max err {jnp.max(jnp.abs(out - ref_f32))}")

    print("KERNEL_OK")
</pallas_src>

<mosaic_0001>
module attributes {stable_mosaic.version = 11 : i64} {
  func.func @_block_kernel(%arg0: i32, %arg1: memref<1x8x32xf32, #tpu.memory_space<vmem>>, %arg2: memref<1x32xf32, #tpu.memory_space<vmem>>, %arg3: memref<1x32xf32, #tpu.memory_space<vmem>>, %arg4: memref<32x32xbf16, #tpu.memory_space<vmem>>, %arg5: memref<32x16xbf16, #tpu.memory_space<vmem>>, %arg6: memref<32x16xbf16, #tpu.memory_space<vmem>>, %arg7: memref<32x8xbf16, #tpu.memory_space<vmem>>, %arg8: memref<32x16xbf16, #tpu.memory_space<vmem>>, %arg9: memref<32x32xbf16, #tpu.memory_space<vmem>>, %arg10: memref<32x64xbf16, #tpu.memory_space<vmem>>, %arg11: memref<32x64xbf16, #tpu.memory_space<vmem>>, %arg12: memref<64x32xbf16, #tpu.memory_space<vmem>>, %arg13: memref<8x4xf32, #tpu.memory_space<vmem>>, %arg14: memref<8x4xf32, #tpu.memory_space<vmem>>, %arg15: memref<1x8x32xf32, #tpu.memory_space<vmem>>) attributes {dimension_semantics = [#tpu.dimension_semantics<parallel>], iteration_bounds = array<i64: 2>, scalar_prefetch = 0 : i64, scratch_operands = 0 : i64, tpu.core_type = #tpu.core_type<tc>, window_params = [{transform_indices = @transform_0, window_bounds = array<i64: 1, 8, 32>}, {pipeline_mode = #tpu.pipeline_mode<synchronous>, transform_indices = @transform_1, window_bounds = array<i64: 1, 32>}, {pipeline_mode = #tpu.pipeline_mode<synchronous>, transform_indices = @transform_2, window_bounds = array<i64: 1, 32>}, {pipeline_mode = #tpu.pipeline_mode<synchronous>, transform_indices = @transform_3, window_bounds = array<i64: 32, 32>}, {pipeline_mode = #tpu.pipeline_mode<synchronous>, transform_indices = @transform_4, window_bounds = array<i64: 32, 16>}, {pipeline_mode = #tpu.pipeline_mode<synchronous>, transform_indices = @transform_5, window_bounds = array<i64: 32, 16>}, {pipeline_mode = #tpu.pipeline_mode<synchronous>, transform_indices = @transform_6, window_bounds = array<i64: 32, 8>}, {pipeline_mode = #tpu.pipeline_mode<synchronous>, transform_indices = @transform_7, window_bounds = array<i64: 32, 16>}, {pipeline_mode = #tpu.pipeline_mode<synchronous>, transform_indices = @transform_8, window_bounds = array<i64: 32, 32>}, {pipeline_mode = #tpu.pipeline_mode<synchronous>, transform_indices = @transform_9, window_bounds = array<i64: 32, 64>}, {pipeline_mode = #tpu.pipeline_mode<synchronous>, transform_indices = @transform_10, window_bounds = array<i64: 32, 64>}, {pipeline_mode = #tpu.pipeline_mode<synchronous>, transform_indices = @transform_11, window_bounds = array<i64: 64, 32>}, {pipeline_mode = #tpu.pipeline_mode<synchronous>, transform_indices = @transform_12, window_bounds = array<i64: 8, 4>}, {pipeline_mode = #tpu.pipeline_mode<synchronous>, transform_indices = @transform_13, window_bounds = array<i64: 8, 4>}, {transform_indices = @transform_14, window_bounds = array<i64: 1, 8, 32>}]} {
    %c0 = arith.constant 0 : index
    %c0_0 = arith.constant 0 : index
    %c0_1 = arith.constant 0 : index
    %0 = vector.load %arg1[%c0, %c0_0, %c0_1] : memref<1x8x32xf32, #tpu.memory_space<vmem>>, vector<1x8x32xf32>
    %1 = vector.shape_cast %0 : vector<1x8x32xf32> to vector<8x32xf32>
    %c0_2 = arith.constant 0 : index
    %c0_3 = arith.constant 0 : index
    %2 = vector.load %arg2[%c0_2, %c0_3] : memref<1x32xf32, #tpu.memory_space<vmem>>, vector<1x32xf32>
    %3 = arith.mulf %1, %1 : vector<8x32xf32>
    %cst = arith.constant dense<0.000000e+00> : vector<8xf32>
    %4 = vector.multi_reduction <add>, %3, %cst [1] : vector<8x32xf32> to vector<8xf32>
    %5 = vector.shape_cast %4 : vector<8xf32> to vector<8x1xf32>
    %cst_4 = arith.constant 3.200000e+01 : f32
    %6 = vector.broadcast %cst_4 : f32 to vector<8x1xf32>
    %7 = arith.divf %5, %6 : vector<8x1xf32>
    %cst_5 = arith.constant 9.99999997E-7 : f32
    %8 = vector.broadcast %cst_5 : f32 to vector<8x1xf32>
    %9 = arith.addf %7, %8 : vector<8x1xf32>
    %10 = math.sqrt %9 : vector<8x1xf32>
    %11 = vector.broadcast %10 : vector<8x1xf32> to vector<8x32xf32>
    %12 = arith.divf %1, %11 : vector<8x32xf32>
    %13 = vector.broadcast %2 : vector<1x32xf32> to vector<8x32xf32>
    %14 = arith.mulf %13, %12 : vector<8x32xf32>
    %15 = arith.truncf %14 : vector<8x32xf32> to vector<8x32xbf16>
    %c0_6 = arith.constant 0 : index
    %c0_7 = arith.constant 0 : index
    %16 = vector.load %arg4[%c0_6, %c0_7] : memref<32x32xbf16, #tpu.memory_space<vmem>>, vector<32x32xbf16>
    %cst_8 = arith.constant dense<0.000000e+00> : vector<8x32xf32>
    %17 = tpu.matmul %15, %16, %cst_8 {dimension_numbers = #tpu.dot_dimension_numbers<[1], [0], [0], [1], [0, 0, 1, 1], [], []>} : vector<8x32xbf16>, vector<32x32xbf16>, vector<8x32xf32> -> vector<8x32xf32>
    %c0_9 = arith.constant 0 : index
    %c0_10 = arith.constant 0 : index
    %18 = vector.load %arg5[%c0_9, %c0_10] : memref<32x16xbf16, #tpu.memory_space<vmem>>, vector<32x16xbf16>
    %cst_11 = arith.constant dense<0.000000e+00> : vector<8x16xf32>
    %19 = tpu.matmul %15, %18, %cst_11 {dimension_numbers = #tpu.dot_dimension_numbers<[1], [0], [0], [1], [0, 0, 1, 1], [], []>} : vector<8x32xbf16>, vector<32x16xbf16>, vector<8x16xf32> -> vector<8x16xf32>
    %c0_12 = arith.constant 0 : index
    %c0_13 = arith.constant 0 : index
    %20 = vector.load %arg6[%c0_12, %c0_13] : memref<32x16xbf16, #tpu.memory_space<vmem>>, vector<32x16xbf16>
    %cst_14 = arith.constant dense<0.000000e+00> : vector<8x16xf32>
    %21 = tpu.matmul %15, %20, %cst_14 {dimension_numbers = #tpu.dot_dimension_numbers<[1], [0], [0], [1], [0, 0, 1, 1], [], []>} : vector<8x32xbf16>, vector<32x16xbf16>, vector<8x16xf32> -> vector<8x16xf32>
    %c0_15 = arith.constant 0 : index
    %c0_16 = arith.constant 0 : index
    %22 = vector.load %arg7[%c0_15, %c0_16] : memref<32x8xbf16, #tpu.memory_space<vmem>>, vector<32x8xbf16>
    %cst_17 = arith.constant dense<0.000000e+00> : vector<8x8xf32>
    %23 = tpu.matmul %15, %22, %cst_17 {dimension_numbers = #tpu.dot_dimension_numbers<[1], [0], [0], [1], [0, 0, 1, 1], [], []>} : vector<8x32xbf16>, vector<32x8xbf16>, vector<8x8xf32> -> vector<8x8xf32>
    %c0_18 = arith.constant 0 : index
    %c0_19 = arith.constant 0 : index
    %24 = vector.load %arg8[%c0_18, %c0_19] : memref<32x16xbf16, #tpu.memory_space<vmem>>, vector<32x16xbf16>
    %cst_20 = arith.constant dense<0.000000e+00> : vector<8x16xf32>
    %25 = tpu.matmul %15, %24, %cst_20 {dimension_numbers = #tpu.dot_dimension_numbers<[1], [0], [0], [1], [0, 0, 1, 1], [], []>} : vector<8x32xbf16>, vector<32x16xbf16>, vector<8x16xf32> -> vector<8x16xf32>
    %c0_21 = arith.constant 0 : index
    %c0_22 = arith.constant 0 : index
    %26 = vector.load %arg13[%c0_21, %c0_22] : memref<8x4xf32, #tpu.memory_space<vmem>>, vector<8x4xf32>
    %c0_23 = arith.constant 0 : index
    %c0_24 = arith.constant 0 : index
    %27 = vector.load %arg14[%c0_23, %c0_24] : memref<8x4xf32, #tpu.memory_space<vmem>>, vector<8x4xf32>
    %28 = vector.extract_strided_slice %21 {offsets = [0, 0], sizes = [8, 8], strides = [1, 1]} : vector<8x16xf32> to vector<8x8xf32>
    %29 = vector.extract_strided_slice %23 {offsets = [0, 0], sizes = [8, 4], strides = [1, 1]} : vector<8x8xf32> to vector<8x4xf32>
    %30 = vector.extract_strided_slice %28 {offsets = [0, 0], sizes = [8, 4], strides = [1, 1]} : vector<8x8xf32> to vector<8x4xf32>
    %31 = arith.mulf %30, %26 : vector<8x4xf32>
    %32 = arith.mulf %29, %27 : vector<8x4xf32>
    %33 = arith.addf %31, %32 : vector<8x4xf32>
    %34 = vector.extract_strided_slice %28 {offsets = [0, 4], sizes = [8, 4], strides = [1, 1]} : vector<8x8xf32> to vector<8x4xf32>
    %35 = tpu.concatenate %33, %34 in 1 : vector<8x4xf32>, vector<8x4xf32> -> vector<8x8xf32>
    %36 = arith.truncf %35 : vector<8x8xf32> to vector<8x8xbf16>
    %37 = vector.extract_strided_slice %25 {offsets = [0, 0], sizes = [8, 8], strides = [1, 1]} : vector<8x16xf32> to vector<8x8xf32>
    %38 = arith.truncf %37 : vector<8x8xf32> to vector<8x8xbf16>
    %39 = vector.extract_strided_slice %17 {offsets = [0, 0], sizes = [8, 8], strides = [1, 1]} : vector<8x32xf32> to vector<8x8xf32>
    %40 = vector.extract_strided_slice %19 {offsets = [0, 0], sizes = [8, 4], strides = [1, 1]} : vector<8x16xf32> to vector<8x4xf32>
    %41 = vector.extract_strided_slice %39 {offsets = [0, 0], sizes = [8, 4], strides = [1, 1]} : vector<8x8xf32> to vector<8x4xf32>
    %42 = arith.mulf %41, %26 : vector<8x4xf32>
    %43 = arith.mulf %40, %27 : vector<8x4xf32>
    %44 = arith.addf %42, %43 : vector<8x4xf32>
    %45 = vector.extract_strided_slice %39 {offsets = [0, 4], sizes = [8, 4], strides = [1, 1]} : vector<8x8xf32> to vector<8x4xf32>
    %46 = tpu.concatenate %44, %45 in 1 : vector<8x4xf32>, vector<8x4xf32> -> vector<8x8xf32>
    %47 = vector.extract_strided_slice %17 {offsets = [0, 8], sizes = [8, 8], strides = [1, 1]} : vector<8x32xf32> to vector<8x8xf32>
    %48 = vector.extract_strided_slice %19 {offsets = [0, 4], sizes = [8, 4], strides = [1, 1]} : vector<8x16xf32> to vector<8x4xf32>
    %49 = vector.extract_strided_slice %47 {offsets = [0, 0], sizes = [8, 4], strides = [1, 1]} : vector<8x8xf32> to vector<8x4xf32>
    %50 = arith.mulf %49, %26 : vector<8x4xf32>
    %51 = arith.mulf %48, %27 : vector<8x4xf32>
    %52 = arith.addf %50, %51 : vector<8x4xf32>
    %53 = vector.extract_strided_slice %47 {offsets = [0, 4], sizes = [8, 4], strides = [1, 1]} : vector<8x8xf32> to vector<8x4xf32>
    %54 = tpu.concatenate %52, %53 in 1 : vector<8x4xf32>, vector<8x4xf32> -> vector<8x8xf32>
    %55 = tpu.concatenate %46, %54 in 0 : vector<8x8xf32>, vector<8x8xf32> -> vector<16x8xf32>
    %56 = arith.truncf %55 : vector<16x8xf32> to vector<16x8xbf16>
    %cst_25 = arith.constant dense<0.000000e+00> : vector<16x8xf32>
    %57 = tpu.matmul %56, %36, %cst_25 {dimension_numbers = #tpu.dot_dimension_numbers<[1], [1], [0], [0], [0, 0, 1, 0], [], []>} : vector<16x8xbf16>, vector<8x8xbf16>, vector<16x8xf32> -> vector<16x8xf32>
    %cst_26 = arith.constant 0.353553385 : f32
    %58 = vector.broadcast %cst_26 : f32 to vector<16x8xf32>
    %59 = arith.mulf %57, %58 : vector<16x8xf32>
    %cst_27 = arith.constant dense<0xFF800000> : vector<16xf32>
    %60 = vector.multi_reduction <maximumf>, %59, %cst_27 [1] : vector<16x8xf32> to vector<16xf32>
    %61 = vector.shape_cast %60 : vector<16xf32> to vector<16x1xf32>
    %62 = vector.broadcast %61 : vector<16x1xf32> to vector<16x8xf32>
    %63 = arith.subf %59, %62 : vector<16x8xf32>
    %64 = math.exp %63 : vector<16x8xf32>
    %cst_28 = arith.constant dense<0.000000e+00> : vector<16xf32>
    %65 = vector.multi_reduction <add>, %64, %cst_28 [1] : vector<16x8xf32> to vector<16xf32>
    %66 = vector.shape_cast %65 : vector<16xf32> to vector<16x1xf32>
    %67 = vector.broadcast %66 : vector<16x1xf32> to vector<16x8xf32>
    %68 = arith.divf %64, %67 : vector<16x8xf32>
    %69 = arith.truncf %68 : vector<16x8xf32> to vector<16x8xbf16>
    %cst_29 = arith.constant dense<0.000000e+00> : vector<16x8xf32>
    %70 = tpu.matmul %69, %38, %cst_29 {dimension_numbers = #tpu.dot_dimension_numbers<[1], [0], [0], [1], [0, 0, 1, 1], [], []>} : vector<16x8xbf16>, vector<8x8xbf16>, vector<16x8xf32> -> vector<16x8xf32>
    %71 = vector.extract_strided_slice %70 {offsets = [0, 0], sizes = [8, 8], strides = [1, 1]} : vector<16x8xf32> to vector<8x8xf32>
    %72 = vector.extract_strided_slice %70 {offsets = [8, 0], sizes = [8, 8], strides = [1, 1]} : vector<16x8xf32> to vector<8x8xf32>
    %73 = vector.extract_strided_slice %21 {offsets = [0, 8], sizes = [8, 8], strides = [1, 1]} : vector<8x16xf32> to vector<8x8xf32>
    %74 = vector.extract_strided_slice %23 {offsets = [0, 4], sizes = [8, 4], strides = [1, 1]} : vector<8x8xf32> to vector<8x4xf32>
    %75 = vector.extract_strided_slice %73 {offsets = [0, 0], sizes = [8, 4], strides = [1, 1]} : vector<8x8xf32> to vector<8x4xf32>
    %76 = arith.mulf %75, %26 : vector<8x4xf32>
    %77 = arith.mulf %74, %27 : vector<8x4xf32>
    %78 = arith.addf %76, %77 : vector<8x4xf32>
    %79 = vector.extract_strided_slice %73 {offsets = [0, 4], sizes = [8, 4], strides = [1, 1]} : vector<8x8xf32> to vector<8x4xf32>
    %80 = tpu.concatenate %78, %79 in 1 : vector<8x4xf32>, vector<8x4xf32> -> vector<8x8xf32>
    %81 = arith.truncf %80 : vector<8x8xf32> to vector<8x8xbf16>
    %82 = vector.extract_strided_slice %25 {offsets = [0, 8], sizes = [8, 8], strides = [1, 1]} : vector<8x16xf32> to vector<8x8xf32>
    %83 = arith.truncf %82 : vector<8x8xf32> to vector<8x8xbf16>
    %84 = vector.extract_strided_slice %17 {offsets = [0, 16], sizes = [8, 8], strides = [1, 1]} : vector<8x32xf32> to vector<8x8xf32>
    %85 = vector.extract_strided_slice %19 {offsets = [0, 8], sizes = [8, 4], strides = [1, 1]} : vector<8x16xf32> to vector<8x4xf32>
    %86 = vector.extract_strided_slice %84 {offsets = [0, 0], sizes = [8, 4], strides = [1, 1]} : vector<8x8xf32> to vector<8x4xf32>
    %87 = arith.mulf %86, %26 : vector<8x4xf32>
    %88 = arith.mulf %85, %27 : vector<8x4xf32>
    %89 = arith.addf %87, %88 : vector<8x4xf32>
    %90 = vector.extract_strided_slice %84 {offsets = [0, 4], sizes = [8, 4], strides = [1, 1]} : vector<8x8xf32> to vector<8x4xf32>
    %91 = tpu.concatenate %89, %90 in 1 : vector<8x4xf32>, vector<8x4xf32> -> vector<8x8xf32>
    %92 = vector.extract_strided_slice %17 {offsets = [0, 24], sizes = [8, 8], strides = [1, 1]} : vector<8x32xf32> to vector<8x8xf32>
    %93 = vector.extract_strided_slice %19 {offsets = [0, 12], sizes = [8, 4], strides = [1, 1]} : vector<8x16xf32> to vector<8x4xf32>
    %94 = vector.extract_strided_slice %92 {offsets = [0, 0], sizes = [8, 4], strides = [1, 1]} : vector<8x8xf32> to vector<8x4xf32>
    %95 = arith.mulf %94, %26 : vector<8x4xf32>
    %96 = arith.mulf %93, %27 : vector<8x4xf32>
    %97 = arith.addf %95, %96 : vector<8x4xf32>
    %98 = vector.extract_strided_slice %92 {offsets = [0, 4], sizes = [8, 4], strides = [1, 1]} : vector<8x8xf32> to vector<8x4xf32>
    %99 = tpu.concatenate %97, %98 in 1 : vector<8x4xf32>, vector<8x4xf32> -> vector<8x8xf32>
    %100 = tpu.concatenate %91, %99 in 0 : vector<8x8xf32>, vector<8x8xf32> -> vector<16x8xf32>
    %101 = arith.truncf %100 : vector<16x8xf32> to vector<16x8xbf16>
    %cst_30 = arith.constant dense<0.000000e+00> : vector<16x8xf32>
    %102 = tpu.matmul %101, %81, %cst_30 {dimension_numbers = #tpu.dot_dimension_numbers<[1], [1], [0], [0], [0, 0, 1, 0], [], []>} : vector<16x8xbf16>, vector<8x8xbf16>, vector<16x8xf32> -> vector<16x8xf32>
    %cst_31 = arith.constant 0.353553385 : f32
    %103 = vector.broadcast %cst_31 : f32 to vector<16x8xf32>
    %104 = arith.mulf %102, %103 : vector<16x8xf32>
    %cst_32 = arith.constant dense<0xFF800000> : vector<16xf32>
    %105 = vector.multi_reduction <maximumf>, %104, %cst_32 [1] : vector<16x8xf32> to vector<16xf32>
    %106 = vector.shape_cast %105 : vector<16xf32> to vector<16x1xf32>
    %107 = vector.broadcast %106 : vector<16x1xf32> to vector<16x8xf32>
    %108 = arith.subf %104, %107 : vector<16x8xf32>
    %109 = math.exp %108 : vector<16x8xf32>
    %cst_33 = arith.constant dense<0.000000e+00> : vector<16xf32>
    %110 = vector.multi_reduction <add>, %109, %cst_33 [1] : vector<16x8xf32> to vector<16xf32>
    %111 = vector.shape_cast %110 : vector<16xf32> to vector<16x1xf32>
    %112 = vector.broadcast %111 : vector<16x1xf32> to vector<16x8xf32>
    %113 = arith.divf %109, %112 : vector<16x8xf32>
    %114 = arith.truncf %113 : vector<16x8xf32> to vector<16x8xbf16>
    %cst_34 = arith.constant dense<0.000000e+00> : vector<16x8xf32>
    %115 = tpu.matmul %114, %83, %cst_34 {dimension_numbers = #tpu.dot_dimension_numbers<[1], [0], [0], [1], [0, 0, 1, 1], [], []>} : vector<16x8xbf16>, vector<8x8xbf16>, vector<16x8xf32> -> vector<16x8xf32>
    %116 = vector.extract_strided_slice %115 {offsets = [0, 0], sizes = [8, 8], strides = [1, 1]} : vector<16x8xf32> to vector<8x8xf32>
    %117 = vector.extract_strided_slice %115 {offsets = [8, 0], sizes = [8, 8], strides = [1, 1]} : vector<16x8xf32> to vector<8x8xf32>
    %118 = tpu.concatenate %71, %72, %116, %117 in 1 : vector<8x8xf32>, vector<8x8xf32>, vector<8x8xf32>, vector<8x8xf32> -> vector<8x32xf32>
    %119 = arith.truncf %118 : vector<8x32xf32> to vector<8x32xbf16>
    %c0_35 = arith.constant 0 : index
    %c0_36 = arith.constant 0 : index
    %120 = vector.load %arg9[%c0_35, %c0_36] : memref<32x32xbf16, #tpu.memory_space<vmem>>, vector<32x32xbf16>
    %cst_37 = arith.constant dense<0.000000e+00> : vector<8x32xf32>
    %121 = tpu.matmul %119, %120, %cst_37 {dimension_numbers = #tpu.dot_dimension_numbers<[1], [0], [0], [1], [0, 0, 1, 1], [], []>} : vector<8x32xbf16>, vector<32x32xbf16>, vector<8x32xf32> -> vector<8x32xf32>
    %122 = arith.addf %1, %121 : vector<8x32xf32>
    %c0_38 = arith.constant 0 : index
    %c0_39 = arith.constant 0 : index
    %123 = vector.load %arg3[%c0_38, %c0_39] : memref<1x32xf32, #tpu.memory_space<vmem>>, vector<1x32xf32>
    %124 = arith.mulf %122, %122 : vector<8x32xf32>
    %cst_40 = arith.constant dense<0.000000e+00> : vector<8xf32>
    %125 = vector.multi_reduction <add>, %124, %cst_40 [1] : vector<8x32xf32> to vector<8xf32>
    %126 = vector.shape_cast %125 : vector<8xf32> to vector<8x1xf32>
    %cst_41 = arith.constant 3.200000e+01 : f32
    %127 = vector.broadcast %cst_41 : f32 to vector<8x1xf32>
    %128 = arith.divf %126, %127 : vector<8x1xf32>
    %cst_42 = arith.constant 9.99999997E-7 : f32
    %129 = vector.broadcast %cst_42 : f32 to vector<8x1xf32>
    %130 = arith.addf %128, %129 : vector<8x1xf32>
    %131 = math.sqrt %130 : vector<8x1xf32>
    %132 = vector.broadcast %131 : vector<8x1xf32> to vector<8x32xf32>
    %133 = arith.divf %122, %132 : vector<8x32xf32>
    %134 = vector.broadcast %123 : vector<1x32xf32> to vector<8x32xf32>
    %135 = arith.mulf %134, %133 : vector<8x32xf32>
    %136 = arith.truncf %135 : vector<8x32xf32> to vector<8x32xbf16>
    %c0_43 = arith.constant 0 : index
    %c0_44 = arith.constant 0 : index
    %137 = vector.load %arg10[%c0_43, %c0_44] : memref<32x64xbf16, #tpu.memory_space<vmem>>, vector<32x64xbf16>
    %cst_45 = arith.constant dense<0.000000e+00> : vector<8x64xf32>
    %138 = tpu.matmul %136, %137, %cst_45 {dimension_numbers = #tpu.dot_dimension_numbers<[1], [0], [0], [1], [0, 0, 1, 1], [], []>} : vector<8x32xbf16>, vector<32x64xbf16>, vector<8x64xf32> -> vector<8x64xf32>
    %c0_46 = arith.constant 0 : index
    %c0_47 = arith.constant 0 : index
    %139 = vector.load %arg11[%c0_46, %c0_47] : memref<32x64xbf16, #tpu.memory_space<vmem>>, vector<32x64xbf16>
    %cst_48 = arith.constant dense<0.000000e+00> : vector<8x64xf32>
    %140 = tpu.matmul %136, %139, %cst_48 {dimension_numbers = #tpu.dot_dimension_numbers<[1], [0], [0], [1], [0, 0, 1, 1], [], []>} : vector<8x32xbf16>, vector<32x64xbf16>, vector<8x64xf32> -> vector<8x64xf32>
    %cst_49 = arith.constant 0.000000e+00 : f32
    %141 = vector.broadcast %cst_49 : f32 to vector<8x64xf32>
    %142 = arith.subf %141, %138 : vector<8x64xf32>
    %143 = math.exp %142 : vector<8x64xf32>
    %cst_50 = arith.constant 1.000000e+00 : f32
    %144 = vector.broadcast %cst_50 : f32 to vector<8x64xf32>
    %145 = arith.addf %144, %143 : vector<8x64xf32>
    %146 = arith.divf %138, %145 : vector<8x64xf32>
    %147 = arith.mulf %146, %140 : vector<8x64xf32>
    %148 = arith.truncf %147 : vector<8x64xf32> to vector<8x64xbf16>
    %c0_51 = arith.constant 0 : index
    %c0_52 = arith.constant 0 : index
    %149 = vector.load %arg12[%c0_51, %c0_52] : memref<64x32xbf16, #tpu.memory_space<vmem>>, vector<64x32xbf16>
    %cst_53 = arith.constant dense<0.000000e+00> : vector<8x32xf32>
    %150 = tpu.matmul %148, %149, %cst_53 {dimension_numbers = #tpu.dot_dimension_numbers<[1], [0], [0], [1], [0, 0, 1, 1], [], []>} : vector<8x64xbf16>, vector<64x32xbf16>, vector<8x32xf32> -> vector<8x32xf32>
    %151 = arith.addf %122, %150 : vector<8x32xf32>
    %c0_54 = arith.constant 0 : index
    %c0_55 = arith.constant 0 : index
    %c0_56 = arith.constant 0 : index
    %152 = vector.load %arg15[%c0_54, %c0_55, %c0_56] : memref<1x8x32xf32, #tpu.memory_space<vmem>>, vector<1x8x32xf32>
    %153 = vector.shape_cast %152 : vector<1x8x32xf32> to vector<8x32xf32>
    %154 = vector.shape_cast %151 : vector<8x32xf32> to vector<1x8x32xf32>
    tpu.vector_store %arg15[%c0_54, %c0_55, %c0_56], %154 {strides = array<i32>} : memref<1x8x32xf32, #tpu.memory_space<vmem>>, vector<1x8x32xf32>,
    return
  }
  func.func @transform_0(%arg0: i32) -> (i32, i32, i32) {
    %c0_i32 = arith.constant 0 : i32
    %c0_i32_0 = arith.constant 0 : i32
    %c0_i32_1 = arith.constant 0 : i32
    return %arg0, %c0_i32, %c0_i32_0 : i32, i32, i32
  }
  func.func @transform_1(%arg0: i32) -> (i32, i32) {
    %c0_i32 = arith.constant 0 : i32
    %c0_i32_0 = arith.constant 0 : i32
    %c0_i32_1 = arith.constant 0 : i32
    return %c0_i32, %c0_i32_0 : i32, i32
  }
  func.func @transform_2(%arg0: i32) -> (i32, i32) {
    %c0_i32 = arith.constant 0 : i32
    %c0_i32_0 = arith.constant 0 : i32
    %c0_i32_1 = arith.constant 0 : i32
    return %c0_i32, %c0_i32_0 : i32, i32
  }
  func.func @transform_3(%arg0: i32) -> (i32, i32) {
    %c0_i32 = arith.constant 0 : i32
    %c0_i32_0 = arith.constant 0 : i32
    %c0_i32_1 = arith.constant 0 : i32
    return %c0_i32, %c0_i32_0 : i32, i32
  }
  func.func @transform_4(%arg0: i32) -> (i32, i32) {
    %c0_i32 = arith.constant 0 : i32
    %c0_i32_0 = arith.constant 0 : i32
    %c0_i32_1 = arith.constant 0 : i32
    return %c0_i32, %c0_i32_0 : i32, i32
  }
  func.func @transform_5(%arg0: i32) -> (i32, i32) {
    %c0_i32 = arith.constant 0 : i32
    %c0_i32_0 = arith.constant 0 : i32
    %c0_i32_1 = arith.constant 0 : i32
    return %c0_i32, %c0_i32_0 : i32, i32
  }
  func.func @transform_6(%arg0: i32) -> (i32, i32) {
    %c0_i32 = arith.constant 0 : i32
    %c0_i32_0 = arith.constant 0 : i32
    %c0_i32_1 = arith.constant 0 : i32
    return %c0_i32, %c0_i32_0 : i32, i32
  }
  func.func @transform_7(%arg0: i32) -> (i32, i32) {
    %c0_i32 = arith.constant 0 : i32
    %c0_i32_0 = arith.constant 0 : i32
    %c0_i32_1 = arith.constant 0 : i32
    return %c0_i32, %c0_i32_0 : i32, i32
  }
  func.func @transform_8(%arg0: i32) -> (i32, i32) {
    %c0_i32 = arith.constant 0 : i32
    %c0_i32_0 = arith.constant 0 : i32
    %c0_i32_1 = arith.constant 0 : i32
    return %c0_i32, %c0_i32_0 : i32, i32
  }
  func.func @transform_9(%arg0: i32) -> (i32, i32) {
    %c0_i32 = arith.constant 0 : i32
    %c0_i32_0 = arith.constant 0 : i32
    %c0_i32_1 = arith.constant 0 : i32
    return %c0_i32, %c0_i32_0 : i32, i32
  }
  func.func @transform_10(%arg0: i32) -> (i32, i32) {
    %c0_i32 = arith.constant 0 : i32
    %c0_i32_0 = arith.constant 0 : i32
    %c0_i32_1 = arith.constant 0 : i32
    return %c0_i32, %c0_i32_0 : i32, i32
  }
  func.func @transform_11(%arg0: i32) -> (i32, i32) {
    %c0_i32 = arith.constant 0 : i32
    %c0_i32_0 = arith.constant 0 : i32
    %c0_i32_1 = arith.constant 0 : i32
    return %c0_i32, %c0_i32_0 : i32, i32
  }
  func.func @transform_12(%arg0: i32) -> (i32, i32) {
    %c0_i32 = arith.constant 0 : i32
    %c0_i32_0 = arith.constant 0 : i32
    %c0_i32_1 = arith.constant 0 : i32
    return %c0_i32, %c0_i32_0 : i32, i32
  }
  func.func @transform_13(%arg0: i32) -> (i32, i32) {
    %c0_i32 = arith.constant 0 : i32
    %c0_i32_0 = arith.constant 0 : i32
    %c0_i32_1 = arith.constant 0 : i32
    return %c0_i32, %c0_i32_0 : i32, i32
  }
  func.func @transform_14(%arg0: i32) -> (i32, i32, i32) {
    %c0_i32 = arith.constant 0 : i32
    %c0_i32_0 = arith.constant 0 : i32
    %c0_i32_1 = arith.constant 0 : i32
    return %arg0, %c0_i32, %c0_i32_0 : i32, i32, i32
  }
}

</mosaic_0001>

<llo_original>
// kernel: tpu_custom_call.1
$region0: #{tpu_custom_call.1}
  #allocation0 [shape = 'u32[]', space=smem, size = 0x4, offset = 0x4, fixed_abs, tag = 'smem constant byte address 0x4 - core index']
  #allocation1 [shape = 'u32[72,128]{1,0:T(1,128)}', space=vmem, size = 0x9000, scoped, tag = 'internal scratch']
  %s0 = inlined_call_operand.vmem [shape: f32[2,8,32], index: 0, kind: input, shape index: {}]
  %s1 = inlined_call_operand.vmem [shape: f32[1,32], index: 1, kind: input, shape index: {}]
  %s2 = inlined_call_operand.vmem [shape: f32[1,32], index: 2, kind: input, shape index: {}]
  %s3 = inlined_call_operand.vmem [shape: bf16[32,32], index: 3, kind: input, shape index: {}]
  %s4 = inlined_call_operand.vmem [shape: bf16[32,16], index: 4, kind: input, shape index: {}]
  %s5 = inlined_call_operand.vmem [shape: bf16[32,16], index: 5, kind: input, shape index: {}]
  %s6 = inlined_call_operand.vmem [shape: bf16[32,8], index: 6, kind: input, shape index: {}]
  %s7 = inlined_call_operand.vmem [shape: bf16[32,16], index: 7, kind: input, shape index: {}]
  %s8 = inlined_call_operand.vmem [shape: bf16[32,32], index: 8, kind: input, shape index: {}]
  %s9 = inlined_call_operand.vmem [shape: bf16[32,64], index: 9, kind: input, shape index: {}]
  %s10 = inlined_call_operand.vmem [shape: bf16[32,64], index: 10, kind: input, shape index: {}]
  %s11 = inlined_call_operand.vmem [shape: bf16[64,32], index: 11, kind: input, shape index: {}]
  %s12 = inlined_call_operand.vmem [shape: f32[8,4], index: 12, kind: input, shape index: {}]
  %s13 = inlined_call_operand.vmem [shape: f32[8,4], index: 13, kind: input, shape index: {}]
  %s14 = inlined_call_operand.hbm [shape: f32[2,8,32], index: 14, kind: output, shape index: {}]
  %s15 = sld [smem:[#allocation0]]
  $region89: #{tpu_custom_call.1} parent=0
    _
  %s17 = ssub.s32 1, %s15
  %s18 = scalar_select 0, %s17, %s15
  $region1: #{tpu_custom_call.1} parent=0
    #allocation2 [shape = 'u8[8192]{0}', space=vmem, size = 0x2000, scoped, tag = 'output window, operand 0']
    #allocation3 [shape = 's32[2]{0}', space=sflag, size = 0x8, scoped, tag = 'scoped memory for tpu_custom_call.1']
    %19 = vsyncpa [#allocation3], 0
    %s20 = scalar_lea.sflag [#allocation3], 1
    %21 = vsyncpa %s20, 0
    loop: start=0, step=1, limit=4
    $region2: #{tpu_custom_call.1} parent=1 // loop_pre_header
      _
    $region3: #{tpu_custom_call.1} parent=1 // loop_header
      %s23 = sphi 0, %s27
      %p24 = scmp.ge.s32.totalorder %s23, 4
      %s33 = sphi 0, %s35
      %s36 = sphi 0, %s33
      %s37 = sphi 0, %s36
      %s53 = sphi 0, %s37
      %s57 = sphi 0, %s57
      %s59 = sphi 0, %s57
      %s60 = sphi 0, %s59
      %s74 = sphi 0, %s60
      %s78 = sphi 0, %s78
      %s80 = sphi 0, %s78
      %s81 = sphi 0, %s80
      %s95 = sphi 0, %s81
      %s99 = sphi 0, %s99
      %s101 = sphi 0, %s99
      %s102 = sphi 0, %s101
      %s116 = sphi 0, %s102
      %s120 = sphi 0, %s120
      %s122 = sphi 0, %s120
      %s123 = sphi 0, %s122
      %s137 = sphi 0, %s123
      %s141 = sphi 0, %s141
      %s143 = sphi 0, %s141
      %s144 = sphi 0, %s143
      %s158 = sphi 0, %s144
      %s162 = sphi 0, %s162
      %s164 = sphi 0, %s162
      %s165 = sphi 0, %s164
      %s179 = sphi 0, %s165
      %s183 = sphi 0, %s183
      %s185 = sphi 0, %s183
      %s186 = sphi 0, %s185
      %s200 = sphi 0, %s186
      %s204 = sphi 0, %s204
      %s206 = sphi 0, %s204
      %s207 = sphi 0, %s206
      %s221 = sphi 0, %s207
      %s225 = sphi 0, %s225
      %s227 = sphi 0, %s225
      %s228 = sphi 0, %s227
      %s242 = sphi 0, %s228
      %s246 = sphi 0, %s246
      %s248 = sphi 0, %s246
      %s249 = sphi 0, %s248
      %s263 = sphi 0, %s249
      %s267 = sphi 0, %s267
      %s269 = sphi 0, %s267
      %s270 = sphi 0, %s269
      %s284 = sphi 0, %s270
      %s288 = sphi 0, %s288
      %s290 = sphi 0, %s288
      %s291 = sphi 0, %s290
      %s305 = sphi 0, %s291
      %s309 = sphi 0, %s309
      %s311 = sphi 0, %s309
      %s312 = sphi 0, %s311
      %s326 = sphi 0, %s312
      %s332 = sphi 0, %s334
      %s335 = sphi 0, %s332
      %s336 = sphi 0, %s335
      %s352 = sphi 0, %s336
    $region4: #{tpu_custom_call.1} parent=1 // loop_header_branch
      %26 = sbr.rel (%p24) target = $region8
    $region5: #{tpu_custom_call.1} parent=1 // loop_body
      %s28 = ssub.s32 %s23, 1
      %s29 = ssub.s32 %s23, 2
      %s30 = sadd.s32 %s23, 1
      %s31 = ssub.s32 %s23, %s30
      %p32 = scmp.eq.s32.totalorder %s31, 0
      %s34 = sadd.s32 %s33, 1
      %s35 = scalar_select %p32, %s33, %s34
      %p38 = pneg %p32
      %p39 = scmp.eq.s32.totalorder %s23, 1
      %p40 = por %p38, %p39
      %p41 = scmp.ne.s32.totalorder %s33, %s36
      %p42 = scmp.eq.s32.totalorder %s23, 0
      %p43 = por %p41, %p42
      %p44 = scmp.ne.s32.totalorder %s33, %s36
      %p45 = scmp.eq.s32.totalorder %s28, 1
      %p46 = por %p44, %p45
      %p47 = scmp.ne.s32.totalorder %s36, %s37
      %p48 = scmp.eq.s32.totalorder %s28, 0
      %p49 = por %p47, %p48
      %p50 = scmp.ne.s32.totalorder %s36, %s37
      %p51 = scmp.eq.s32.totalorder %s29, 1
      %p52 = por %p50, %p51
      %p54 = scmp.ne.s32.totalorder %s37, %s53
      %p55 = scmp.eq.s32.totalorder %s29, 0
      %p56 = por %p54, %p55
      %s58 = sadd.s32 %s57, 1
      %p61 = scmp.eq.s32.totalorder %s23, 1
      %p62 = scmp.ne.s32.totalorder %s57, %s59
      %p63 = scmp.eq.s32.totalorder %s23, 0
      %p64 = por %p62, %p63
      %p65 = scmp.ne.s32.totalorder %s57, %s59
      %p66 = scmp.eq.s32.totalorder %s28, 1
      %p67 = por %p65, %p66
      %p68 = scmp.ne.s32.totalorder %s59, %s60
      %p69 = scmp.eq.s32.totalorder %s28, 0
      %p70 = por %p68, %p69
      %p71 = scmp.ne.s32.totalorder %s59, %s60
      %p72 = scmp.eq.s32.totalorder %s29, 1
      %p73 = por %p71, %p72
      %p75 = scmp.ne.s32.totalorder %s60, %s74
      %p76 = scmp.eq.s32.totalorder %s29, 0
      %p77 = por %p75, %p76
      %s79 = sadd.s32 %s78, 1
      %p82 = scmp.eq.s32.totalorder %s23, 1
      %p83 = scmp.ne.s32.totalorder %s78, %s80
      %p84 = scmp.eq.s32.totalorder %s23, 0
      %p85 = por %p83, %p84
      %p86 = scmp.ne.s32.totalorder %s78, %s80
      %p87 = scmp.eq.s32.totalorder %s28, 1
      %p88 = por %p86, %p87
      %p89 = scmp.ne.s32.totalorder %s80, %s81
      %p90 = scmp.eq.s32.totalorder %s28, 0
      %p91 = por %p89, %p90
      %p92 = scmp.ne.s32.totalorder %s80, %s81
      %p93 = scmp.eq.s32.totalorder %s29, 1
      %p94 = por %p92, %p93
      %p96 = scmp.ne.s32.totalorder %s81, %s95
      %p97 = scmp.eq.s32.totalorder %s29, 0
      %p98 = por %p96, %p97
      %s100 = sadd.s32 %s99, 1
      %p103 = scmp.eq.s32.totalorder %s23, 1
      %p104 = scmp.ne.s32.totalorder %s99, %s101
      %p105 = scmp.eq.s32.totalorder %s23, 0
      %p106 = por %p104, %p105
      %p107 = scmp.ne.s32.totalorder %s99, %s101
      %p108 = scmp.eq.s32.totalorder %s28, 1
      %p109 = por %p107, %p108
      %p110 = scmp.ne.s32.totalorder %s101, %s102
      %p111 = scmp.eq.s32.totalorder %s28, 0
      %p112 = por %p110, %p111
      %p113 = scmp.ne.s32.totalorder %s101, %s102
      %p114 = scmp.eq.s32.totalorder %s29, 1
      %p115 = por %p113, %p114
      %p117 = scmp.ne.s32.totalorder %s102, %s116
      %p118 = scmp.eq.s32.totalorder %s29, 0
      %p119 = por %p117, %p118
      %s121 = sadd.s32 %s120, 1
      %p124 = scmp.eq.s32.totalorder %s23, 1
      %p125 = scmp.ne.s32.totalorder %s120, %s122
      %p126 = scmp.eq.s32.totalorder %s23, 0
      %p127 = por %p125, %p126
      %p128 = scmp.ne.s32.totalorder %s120, %s122
      %p129 = scmp.eq.s32.totalorder %s28, 1
      %p130 = por %p128, %p129
      %p131 = scmp.ne.s32.totalorder %s122, %s123
      %p132 = scmp.eq.s32.totalorder %s28, 0
      %p133 = por %p131, %p132
      %p134 = scmp.ne.s32.totalorder %s122, %s123
      %p135 = scmp.eq.s32.totalorder %s29, 1
      %p136 = por %p134, %p135
      %p138 = scmp.ne.s32.totalorder %s123, %s137
      %p139 = scmp.eq.s32.totalorder %s29, 0
      %p140 = por %p138, %p139
      %s142 = sadd.s32 %s141, 1
      %p145 = scmp.eq.s32.totalorder %s23, 1
      %p146 = scmp.ne.s32.totalorder %s141, %s143
      %p147 = scmp.eq.s32.totalorder %s23, 0
      %p148 = por %p146, %p147
      %p149 = scmp.ne.s32.totalorder %s141, %s143
      %p150 = scmp.eq.s32.totalorder %s28, 1
      %p151 = por %p149, %p150
      %p152 = scmp.ne.s32.totalorder %s143, %s144
      %p153 = scmp.eq.s32.totalorder %s28, 0
      %p154 = por %p152, %p153
      %p155 = scmp.ne.s32.totalorder %s143, %s144
      %p156 = scmp.eq.s32.totalorder %s29, 1
      %p157 = por %p155, %p156
      %p159 = scmp.ne.s32.totalorder %s144, %s158
      %p160 = scmp.eq.s32.totalorder %s29, 0
      %p161 = por %p159, %p160
      %s163 = sadd.s32 %s162, 1
      %p166 = scmp.eq.s32.totalorder %s23, 1
      %p167 = scmp.ne.s32.totalorder %s162, %s164
      %p168 = scmp.eq.s32.totalorder %s23, 0
      %p169 = por %p167, %p168
      %p170 = scmp.ne.s32.totalorder %s162, %s164
      %p171 = scmp.eq.s32.totalorder %s28, 1
      %p172 = por %p170, %p171
      %p173 = scmp.ne.s32.totalorder %s164, %s165
      %p174 = scmp.eq.s32.totalorder %s28, 0
      %p175 = por %p173, %p174
      %p176 = scmp.ne.s32.totalorder %s164, %s165
      %p177 = scmp.eq.s32.totalorder %s29, 1
      %p178 = por %p176, %p177
      %p180 = scmp.ne.s32.totalorder %s165, %s179
      %p181 = scmp.eq.s32.totalorder %s29, 0
      %p182 = por %p180, %p181
      %s184 = sadd.s32 %s183, 1
      %p187 = scmp.eq.s32.totalorder %s23, 1
      %p188 = scmp.ne.s32.totalorder %s183, %s185
      %p189 = scmp.eq.s32.totalorder %s23, 0
      %p190 = por %p188, %p189
      %p191 = scmp.ne.s32.totalorder %s183, %s185
      %p192 = scmp.eq.s32.totalorder %s28, 1
      %p193 = por %p191, %p192
      %p194 = scmp.ne.s32.totalorder %s185, %s186
      %p195 = scmp.eq.s32.totalorder %s28, 0
      %p196 = por %p194, %p195
      %p197 = scmp.ne.s32.totalorder %s185, %s186
      %p198 = scmp.eq.s32.totalorder %s29, 1
      %p199 = por %p197, %p198
      %p201 = scmp.ne.s32.totalorder %s186, %s200
      %p202 = scmp.eq.s32.totalorder %s29, 0
      %p203 = por %p201, %p202
      %s205 = sadd.s32 %s204, 1
      %p208 = scmp.eq.s32.totalorder %s23, 1
      %p209 = scmp.ne.s32.totalorder %s204, %s206
      %p210 = scmp.eq.s32.totalorder %s23, 0
      %p211 = por %p209, %p210
      %p212 = scmp.ne.s32.totalorder %s204, %s206
      %p213 = scmp.eq.s32.totalorder %s28, 1
      %p214 = por %p212, %p213
      %p215 = scmp.ne.s32.totalorder %s206, %s207
      %p216 = scmp.eq.s32.totalorder %s28, 0
      %p217 = por %p215, %p216
      %p218 = scmp.ne.s32.totalorder %s206, %s207
      %p219 = scmp.eq.s32.totalorder %s29, 1
      %p220 = por %p218, %p219
      %p222 = scmp.ne.s32.totalorder %s207, %s221
      %p223 = scmp.eq.s32.totalorder %s29, 0
      %p224 = por %p222, %p223
      %s226 = sadd.s32 %s225, 1
      %p229 = scmp.eq.s32.totalorder %s23, 1
      %p230 = scmp.ne.s32.totalorder %s225, %s227
      %p231 = scmp.eq.s32.totalorder %s23, 0
      %p232 = por %p230, %p231
      %p233 = scmp.ne.s32.totalorder %s225, %s227
      %p234 = scmp.eq.s32.totalorder %s28, 1
      %p235 = por %p233, %p234
      %p236 = scmp.ne.s32.totalorder %s227, %s228
      %p237 = scmp.eq.s32.totalorder %s28, 0
      %p238 = por %p236, %p237
      %p239 = scmp.ne.s32.totalorder %s227, %s228
      %p240 = scmp.eq.s32.totalorder %s29, 1
      %p241 = por %p239, %p240
      %p243 = scmp.ne.s32.totalorder %s228, %s242
      %p244 = scmp.eq.s32.totalorder %s29, 0
      %p245 = por %p243, %p244
      %s247 = sadd.s32 %s246, 1
      %p250 = scmp.eq.s32.totalorder %s23, 1
      %p251 = scmp.ne.s32.totalorder %s246, %s248
      %p252 = scmp.eq.s32.totalorder %s23, 0
      %p253 = por %p251, %p252
      %p254 = scmp.ne.s32.totalorder %s246, %s248
      %p255 = scmp.eq.s32.totalorder %s28, 1
      %p256 = por %p254, %p255
      %p257 = scmp.ne.s32.totalorder %s248, %s249
      %p258 = scmp.eq.s32.totalorder %s28, 0
      %p259 = por %p257, %p258
      %p260 = scmp.ne.s32.totalorder %s248, %s249
      %p261 = scmp.eq.s32.totalorder %s29, 1
      %p262 = por %p260, %p261
      %p264 = scmp.ne.s32.totalorder %s249, %s263
      %p265 = scmp.eq.s32.totalorder %s29, 0
      %p266 = por %p264, %p265
      %s268 = sadd.s32 %s267, 1
      %p271 = scmp.eq.s32.totalorder %s23, 1
      %p272 = scmp.ne.s32.totalorder %s267, %s269
      %p273 = scmp.eq.s32.totalorder %s23, 0
      %p274 = por %p272, %p273
      %p275 = scmp.ne.s32.totalorder %s267, %s269
      %p276 = scmp.eq.s32.totalorder %s28, 1
      %p277 = por %p275, %p276
      %p278 = scmp.ne.s32.totalorder %s269, %s270
      %p279 = scmp.eq.s32.totalorder %s28, 0
      %p280 = por %p278, %p279
      %p281 = scmp.ne.s32.totalorder %s269, %s270
      %p282 = scmp.eq.s32.totalorder %s29, 1
      %p283 = por %p281, %p282
      %p285 = scmp.ne.s32.totalorder %s270, %s284
      %p286 = scmp.eq.s32.totalorder %s29, 0
      %p287 = por %p285, %p286
      %s289 = sadd.s32 %s288, 1
      %p292 = scmp.eq.s32.totalorder %s23, 1
      %p293 = scmp.ne.s32.totalorder %s288, %s290
      %p294 = scmp.eq.s32.totalorder %s23, 0
      %p295 = por %p293, %p294
      %p296 = scmp.ne.s32.totalorder %s288, %s290
      %p297 = scmp.eq.s32.totalorder %s28, 1
      %p298 = por %p296, %p297
      %p299 = scmp.ne.s32.totalorder %s290, %s291
      %p300 = scmp.eq.s32.totalorder %s28, 0
      %p301 = por %p299, %p300
      %p302 = scmp.ne.s32.totalorder %s290, %s291
      %p303 = scmp.eq.s32.totalorder %s29, 1
      %p304 = por %p302, %p303
      %p306 = scmp.ne.s32.totalorder %s291, %s305
      %p307 = scmp.eq.s32.totalorder %s29, 0
      %p308 = por %p306, %p307
      %s310 = sadd.s32 %s309, 1
      %p313 = scmp.eq.s32.totalorder %s23, 1
      %p314 = scmp.ne.s32.totalorder %s309, %s311
      %p315 = scmp.eq.s32.totalorder %s23, 0
      %p316 = por %p314, %p315
      %p317 = scmp.ne.s32.totalorder %s309, %s311
      %p318 = scmp.eq.s32.totalorder %s28, 1
      %p319 = por %p317, %p318
      %p320 = scmp.ne.s32.totalorder %s311, %s312
      %p321 = scmp.eq.s32.totalorder %s28, 0
      %p322 = por %p320, %p321
      %p323 = scmp.ne.s32.totalorder %s311, %s312
      %p324 = scmp.eq.s32.totalorder %s29, 1
      %p325 = por %p323, %p324
      %p327 = scmp.ne.s32.totalorder %s312, %s326
      %p328 = scmp.eq.s32.totalorder %s29, 0
      %p329 = por %p327, %p328
      %s330 = ssub.s32 %s23, %s30
      %p331 = scmp.eq.s32.totalorder %s330, 0
      %s333 = sadd.s32 %s332, 1
      %s334 = scalar_select %p331, %s332, %s333
      %p337 = pneg %p331
      %p338 = scmp.eq.s32.totalorder %s23, 1
      %p339 = por %p337, %p338
      %p340 = scmp.ne.s32.totalorder %s332, %s335
      %p341 = scmp.eq.s32.totalorder %s23, 0
      %p342 = por %p340, %p341
      %p343 = scmp.ne.s32.totalorder %s332, %s335
      %p344 = scmp.eq.s32.totalorder %s28, 1
      %p345 = por %p343, %p344
      %p346 = scmp.ne.s32.totalorder %s335, %s336
      %p347 = scmp.eq.s32.totalorder %s28, 0
      %p348 = por %p346, %p347
      %p349 = scmp.ne.s32.totalorder %s335, %s336
      %p350 = scmp.eq.s32.totalorder %s29, 1
      %p351 = por %p349, %p350
      %p353 = scmp.ne.s32.totalorder %s336, %s352
      %p354 = scmp.eq.s32.totalorder %s29, 0
      %p355 = por %p353, %p354
      %p356 = scmp.le.s32.totalorder 1, %s23
      %p357 = scmp.lt.s32.totalorder %s23, 3
      %p358 = pnand %p356, %p357
      %p359 = pneg %p358
      // Predicated region
      $region9: #{tpu_custom_call.1} parent=5 // pred_check
        _
      $region10: #{tpu_custom_call.1} parent=5 // pred_check_branch
        %361 = sbr.rel (%p358) target = $region12
      $region11: #{tpu_custom_call.1} parent=5 // pred_region
        %s362 = ssub.s32 %s23, 1
        // Predicated region
        $region13: #{tpu_custom_call.1} parent=11 // pred_check
          %p363 = pneg %p70
        $region14: #{tpu_custom_call.1} parent=11 // pred_check_branch
          %365 = sbr.rel (%p363) target = $region16
        $region15: #{tpu_custom_call.1} parent=11 // pred_region
          _
        $region16: #{tpu_custom_call.1} parent=11 // pred_fallthru
          _
        // Predicated region
        $region17: #{tpu_custom_call.1} parent=11 // pred_check
          %p366 = pneg %p91
        $region18: #{tpu_custom_call.1} parent=11 // pred_check_branch
          %368 = sbr.rel (%p366) target = $region20
        $region19: #{tpu_custom_call.1} parent=11 // pred_region
          _
        $region20: #{tpu_custom_call.1} parent=11 // pred_fallthru
          _
        // Predicated region
        $region21: #{tpu_custom_call.1} parent=11 // pred_check
          %p369 = pneg %p112
        $region22: #{tpu_custom_call.1} parent=11 // pred_check_branch
          %371 = sbr.rel (%p369) target = $region24
        $region23: #{tpu_custom_call.1} parent=11 // pred_region
          _
        $region24: #{tpu_custom_call.1} parent=11 // pred_fallthru
          _
        // Predicated region
        $region25: #{tpu_custom_call.1} parent=11 // pred_check
          %p372 = pneg %p133
        $region26: #{tpu_custom_call.1} parent=11 // pred_check_branch
          %374 = sbr.rel (%p372) target = $region28
        $region27: #{tpu_custom_call.1} parent=11 // pred_region
          _
        $region28: #{tpu_custom_call.1} parent=11 // pred_fallthru
          _
        // Predicated region
        $region29: #{tpu_custom_call.1} parent=11 // pred_check
          %p375 = pneg %p154
        $region30: #{tpu_custom_call.1} parent=11 // pred_check_branch
          %377 = sbr.rel (%p375) target = $region32
        $region31: #{tpu_custom_call.1} parent=11 // pred_region
          _
        $region32: #{tpu_custom_call.1} parent=11 // pred_fallthru
          _
        // Predicated region
        $region33: #{tpu_custom_call.1} parent=11 // pred_check
          %p378 = pneg %p175
        $region34: #{tpu_custom_call.1} parent=11 // pred_check_branch
          %380 = sbr.rel (%p378) target = $region36
        $region35: #{tpu_custom_call.1} parent=11 // pred_region
          _
        $region36: #{tpu_custom_call.1} parent=11 // pred_fallthru
          _
        // Predicated region
        $region37: #{tpu_custom_call.1} parent=11 // pred_check
          %p381 = pneg %p196
        $region38: #{tpu_custom_call.1} parent=11 // pred_check_branch
          %383 = sbr.rel (%p381) target = $region40
        $region39: #{tpu_custom_call.1} parent=11 // pred_region
          _
        $region40: #{tpu_custom_call.1} parent=11 // pred_fallthru
          _
        // Predicated region
        $region41: #{tpu_custom_call.1} parent=11 // pred_check
          %p384 = pneg %p217
        $region42: #{tpu_custom_call.1} parent=11 // pred_check_branch
          %386 = sbr.rel (%p384) target = $region44
        $region43: #{tpu_custom_call.1} parent=11 // pred_region
          _
        $region44: #{tpu_custom_call.1} parent=11 // pred_fallthru
          _
        // Predicated region
        $region45: #{tpu_custom_call.1} parent=11 // pred_check
          %p387 = pneg %p238
        $region46: #{tpu_custom_call.1} parent=11 // pred_check_branch
          %389 = sbr.rel (%p387) target = $region48
        $region47: #{tpu_custom_call.1} parent=11 // pred_region
          _
        $region48: #{tpu_custom_call.1} parent=11 // pred_fallthru
          _
        // Predicated region
        $region49: #{tpu_custom_call.1} parent=11 // pred_check
          %p390 = pneg %p259
        $region50: #{tpu_custom_call.1} parent=11 // pred_check_branch
          %392 = sbr.rel (%p390) target = $region52
        $region51: #{tpu_custom_call.1} parent=11 // pred_region
          _
        $region52: #{tpu_custom_call.1} parent=11 // pred_fallthru
          _
        // Predicated region
        $region53: #{tpu_custom_call.1} parent=11 // pred_check
          %p393 = pneg %p280
        $region54: #{tpu_custom_call.1} parent=11 // pred_check_branch
          %395 = sbr.rel (%p393) target = $region56
        $region55: #{tpu_custom_call.1} parent=11 // pred_region
          _
        $region56: #{tpu_custom_call.1} parent=11 // pred_fallthru
          _
        // Predicated region
        $region57: #{tpu_custom_call.1} parent=11 // pred_check
          %p396 = pneg %p301
        $region58: #{tpu_custom_call.1} parent=11 // pred_check_branch
          %398 = sbr.rel (%p396) target = $region60
        $region59: #{tpu_custom_call.1} parent=11 // pred_region
          _
        $region60: #{tpu_custom_call.1} parent=11 // pred_fallthru
          _
        // Predicated region
        $region61: #{tpu_custom_call.1} parent=11 // pred_check
          %p399 = pneg %p322
        $region62: #{tpu_custom_call.1} parent=11 // pred_check_branch
          %401 = sbr.rel (%p399) target = $region64
        $region63: #{tpu_custom_call.1} parent=11 // pred_region
          _
        $region64: #{tpu_custom_call.1} parent=11 // pred_fallthru
          _
      $region12: #{tpu_custom_call.1} parent=5 // pred_fallthru
        _
      %p402 = scmp.lt.s32.totalorder %s23, 2
      // Predicated region
      $region65: #{tpu_custom_call.1} parent=5 // pred_check
        %p403 = pneg %p402
      $region66: #{tpu_custom_call.1} parent=5 // pred_check_branch
        %405 = sbr.rel (%p403) target = $region68
      $region67: #{tpu_custom_call.1} parent=5 // pred_region
        // Predicated region
        $region69: #{tpu_custom_call.1} parent=67 // pred_check
          %p406 = pneg %p43
        $region70: #{tpu_custom_call.1} parent=67 // pred_check_branch
          %408 = sbr.rel (%p406) target = $region72
        $region71: #{tpu_custom_call.1} parent=67 // pred_region
          %p409 = scmp.lt.s32.totalorder %s23, 1
          %s410 = scalar_select %p409, %s23, 1
          %s411 = smul.addr %s410, 8
          %s412 = scalar_lea.vmem %s0, %s411
        $region72: #{tpu_custom_call.1} parent=67 // pred_fallthru
          _
      $region68: #{tpu_custom_call.1} parent=5 // pred_fallthru
        _
      %p413 = scmp.le.s32.totalorder 1, %s23
      %p414 = scmp.lt.s32.totalorder %s23, 3
      %p415 = pnand %p413, %p414
      %p416 = pneg %p415
      // Predicated region
      $region73: #{tpu_custom_call.1} parent=5 // pred_check
        _
      $region74: #{tpu_custom_call.1} parent=5 // pred_check_branch
        %418 = sbr.rel (%p415) target = $region76
      $region75: #{tpu_custom_call.1} parent=5 // pred_region
        %s419 = ssub.s32 %s23, 1
        %p420 = scmp.lt.s32.totalorder %s28, 1
        %s421 = scalar_select %p420, %s28, 1
        %s422 = smul.addr %s421, 8
        %s423 = scalar_lea.vmem %s0, %s422
        %p424 = pneg %p49
        %p425 = pneg %p46
        %p426 = pneg %p70
        %p427 = pneg %p67
        %p428 = pneg %p91
        %p429 = pneg %p88
        %p430 = pneg %p112
        %p431 = pneg %p109
        %p432 = pneg %p133
        %p433 = pneg %p130
        %p434 = pneg %p154
        %p435 = pneg %p151
        %p436 = pneg %p175
        %p437 = pneg %p172
        %p438 = pneg %p196
        %p439 = pneg %p193
        %p440 = pneg %p217
        %p441 = pneg %p214
        %p442 = pneg %p238
        %p443 = pneg %p235
        %p444 = pneg %p259
        %p445 = pneg %p256
        %p446 = pneg %p280
        %p447 = pneg %p277
        %p448 = pneg %p301
        %p449 = pneg %p298
        %p450 = pneg %p322
        %p451 = pneg %p319
        %p452 = pneg %p348
        %p453 = pneg %p345
        %s454 = sand.u32 %s335, 1
        %s455 = scalar_lea.sflag [#allocation3], %s454
        %s456 = sand.u32 %s335, 1
        %s457 = smul.addr %s456, 8
        %s458 = scalar_lea.vmem [#allocation2], %s457
        %p459 = scmp.lt.s32.totalorder %s28, 1
        %s460 = scalar_select %p459, %s28, 1
        %s461 = smul.addr %s460, 8
        %s462 = scalar_lea.vmem %s0, %s461
        %v464 = vld [vmem:[%s462] sm:$0xff]
        %v465 = vld [vmem:[%s1] sm:$0x1]
        %v466 = vmul.f32 %v464, %v464
        %vm467 = vcmask 261120
        %v468 = vsel %vm467, %v466, 0.0
        %469 = vadd.xlane.f32.xlu0 %v468
        %v470 = vpop.xlane.xlu0 %469
        %v471 = vrcp.pop 32.0
        %v472 = vmul.f32 32.0, %v471
        %v473 = vsub.f32 1.0, %v472
        %v474 = vmul.f32 %v471, %v473
        %v475 = vadd.f32 %v471, %v474
        %vm476 = vweird.f32 %v471
        %v477 = vsel %vm476, %v471, %v475
        %v478 = vmul.f32 %v470, %v477
        %v479 = vadd.f32 %v478, 1e-06
        %v480 = vrsqrt.pop %v479
        %v481 = vmul.f32 %v480, %v479
        %v482 = vmul.f32 %v481, %v480
        %v483 = vmul.f32 0.5, %v482
        %v484 = vsub.f32 1.5, %v483
        %v485 = vmul.f32 %v480, %v484
        %v486 = vmul.f32 %v479, %v485
        %vm487 = vcmp.eq.f32.partialorder %v479, inf
        %v488 = vsel %vm487, %v479, %v486
        %vm489 = vcmp.eq.f32.partialorder %v479, 0.0
        %v490 = vand.u32 %v479, 2147483648
        %v491 = vsel %vm489, %v490, %v488
        %v492 = vrcp.pop %v491
        %v493 = vmul.f32 %v491, %v492
        %v494 = vsub.f32 1.0, %v493
        %v495 = vmul.f32 %v492, %v494
        %v496 = vadd.f32 %v492, %v495
        %vm497 = vweird.f32 %v491
        %vm498 = vweird.f32 %v492
        %vm499 = vmor %vm497, %vm498
        %v500 = vsel %vm499, %v492, %v496
        %v501 = vand.u32 2147483647, %v491
        %vm502 = vcmp.eq.f32.partialorder %v501, 8.507059e+37
        %v503 = vand.u32 %v491, 2147483648
        %v504 = vor.u32 1.1754944e-38, %v503
        %v505 = vsel %vm502, %v504, %v500
        %v506 = vmul.f32 %v464, %v505
        %v508 = vperm.slane %v465, 0
        %v510 = vmul.f32 %v508, %v506
        %v511 = vpack.c.bf16 %v510, %v510
        %v512 = vld [vmem:[%s3] sm:$0xf]
        %v513 = vld [vmem:[%s3 + $0x4] sm:$0xf]
        %v514 = vld [vmem:[%s3 + $0x8] sm:$0xf]
        %v515 = vld [vmem:[%s3 + $0xc] sm:$0xf]
        %v520 = vunpack.c.l.b16 %v512
        %v521 = vunpack.c.l.b16 %v513
        %v522 = vunpack.c.l.b16 %v514
        %v523 = vunpack.c.l.b16 %v515
        %v524 = vpack.c.b16 %v521, %v520
        %v525 = vpack.c.b16 %v523, %v522
        %v529 = vsel %vm467, %v511, 0
        %531 = vmatpush.bf16.msra.mxu0 0
        %532 = vmatpush.bf16.msra.mxu0 0
        %533 = vmatpush.bf16.msra.mxu0 0
        %534 = vmatpush.bf16.msra.mxu0 0
        %535 = vmatpush.bf16.msra.mxu0 0
        %536 = vmatpush.bf16.msra.mxu0 0
        %537 = vmatpush.bf16.msra.mxu0 %v525
        %538 = vmatpush.bf16.msra.mxu0 %v524
        %539 = vmatmul.bf16.gmra.mxu0 %v529
        %v540 = vpop.f32.mrf.mxu0
        %v541 = vadd.f32 0.0, %v540
        %v542 = vpop.f32.mrf.mxu0
        %543 = vdwg.mxu0
        %v544 = vld [vmem:[%s4] sm:$0xf]
        %v545 = vld [vmem:[%s4 + $0x4] sm:$0xf]
        %v546 = vld [vmem:[%s4 + $0x8] sm:$0xf]
        %v547 = vld [vmem:[%s4 + $0xc] sm:$0xf]
        %v552 = vunpack.c.l.b16 %v544
        %v553 = vunpack.c.l.b16 %v545
        %v554 = vunpack.c.l.b16 %v546
        %v555 = vunpack.c.l.b16 %v547
        %v556 = vpack.c.b16 %v553, %v552
        %v557 = vpack.c.b16 %v555, %v554
        %560 = vmatpush.bf16.msra.mxu0 0
        %561 = vmatpush.bf16.msra.mxu0 0
        %562 = vmatpush.bf16.msra.mxu0 0
        %563 = vmatpush.bf16.msra.mxu0 0
        %564 = vmatpush.bf16.msra.mxu0 0
        %565 = vmatpush.bf16.msra.mxu0 0
        %566 = vmatpush.bf16.msra.mxu0 %v557
        %567 = vmatpush.bf16.msra.mxu0 %v556
        %568 = vmatmul.bf16.gmra.mxu0 %v529
        %v569 = vpop.f32.mrf.mxu0
        %v570 = vadd.f32 0.0, %v569
        %v571 = vpop.f32.mrf.mxu0
        %572 = vdwg.mxu0
        %v573 = vld [vmem:[%s5] sm:$0xf]
        %v574 = vld [vmem:[%s5 + $0x4] sm:$0xf]
        %v575 = vld [vmem:[%s5 + $0x8] sm:$0xf]
        %v576 = vld [vmem:[%s5 + $0xc] sm:$0xf]
        %v581 = vunpack.c.l.b16 %v573
        %v582 = vunpack.c.l.b16 %v574
        %v583 = vunpack.c.l.b16 %v575
        %v584 = vunpack.c.l.b16 %v576
        %v585 = vpack.c.b16 %v582, %v581
        %v586 = vpack.c.b16 %v584, %v583
        %589 = vmatpush.bf16.msra.mxu0 0
        %590 = vmatpush.bf16.msra.mxu0 0
        %591 = vmatpush.bf16.msra.mxu0 0
        %592 = vmatpush.bf16.msra.mxu0 0
        %593 = vmatpush.bf16.msra.mxu0 0
        %594 = vmatpush.bf16.msra.mxu0 0
        %595 = vmatpush.bf16.msra.mxu0 %v586
        %596 = vmatpush.bf16.msra.mxu0 %v585
        %597 = vmatmul.bf16.gmra.mxu0 %v529
        %v598 = vpop.f32.mrf.mxu0
        %v599 = vadd.f32 0.0, %v598
        %v600 = vpop.f32.mrf.mxu0
        %601 = vdwg.mxu0
        %v602 = vld [vmem:[%s6] sm:$0xf]
        %v603 = vld [vmem:[%s6 + $0x4] sm:$0xf]
        %v604 = vld [vmem:[%s6 + $0x8] sm:$0xf]
        %v605 = vld [vmem:[%s6 + $0xc] sm:$0xf]
        %v610 = vunpack.c.l.b16 %v602
        %v611 = vunpack.c.l.b16 %v603
        %v612 = vunpack.c.l.b16 %v604
        %v613 = vunpack.c.l.b16 %v605
        %v614 = vpack.c.b16 %v611, %v610
        %v615 = vpack.c.b16 %v613, %v612
        %618 = vmatpush.bf16.msra.mxu0 0
        %619 = vmatpush.bf16.msra.mxu0 0
        %620 = vmatpush.bf16.msra.mxu0 0
        %621 = vmatpush.bf16.msra.mxu0 0
        %622 = vmatpush.bf16.msra.mxu0 0
        %623 = vmatpush.bf16.msra.mxu0 0
        %624 = vmatpush.bf16.msra.mxu0 %v615
        %625 = vmatpush.bf16.msra.mxu0 %v614
        %626 = vmatmul.bf16.gmra.mxu0 %v529
        %v627 = vpop.f32.mrf.mxu0
        %v628 = vadd.f32 0.0, %v627
        %v629 = vpop.f32.mrf.mxu0
        %630 = vdwg.mxu0
        %v631 = vld [vmem:[%s7] sm:$0xf]
        %v632 = vld [vmem:[%s7 + $0x4] sm:$0xf]
        %v633 = vld [vmem:[%s7 + $0x8] sm:$0xf]
        %v634 = vld [vmem:[%s7 + $0xc] sm:$0xf]
        %v639 = vunpack.c.l.b16 %v631
        %v640 = vunpack.c.l.b16 %v632
        %v641 = vunpack.c.l.b16 %v633
        %v642 = vunpack.c.l.b16 %v634
        %v643 = vpack.c.b16 %v640, %v639
        %v644 = vpack.c.b16 %v642, %v641
        %647 = vmatpush.bf16.msra.mxu0 0
        %648 = vmatpush.bf16.msra.mxu0 0
        %649 = vmatpush.bf16.msra.mxu0 0
        %650 = vmatpush.bf16.msra.mxu0 0
        %651 = vmatpush.bf16.msra.mxu0 0
        %652 = vmatpush.bf16.msra.mxu0 0
        %653 = vmatpush.bf16.msra.mxu0 %v644
        %654 = vmatpush.bf16.msra.mxu0 %v643
        %655 = vmatmul.bf16.gmra.mxu0 %v529
        %v656 = vpop.f32.mrf.mxu0
        %v657 = vadd.f32 0.0, %v656
        %v658 = vpop.f32.mrf.mxu0
        %659 = vdwg.mxu0
        %v660 = vld [vmem:[%s12] sm:$0xff]
        %v661 = vld [vmem:[%s13] sm:$0xff]
        %v662 = vmul.f32 %v599, %v660
        %v663 = vmul.f32 %v628, %v661
        %v664 = vadd.f32 %v662, %v663
        %vm665 = vcmask 31744
        %v666 = vsel %vm665, %v664, %v599
        %v667 = vpack.c.bf16 %v666, %v666
        %v668 = vpack.c.bf16 %v657, %v657
        %v669 = vmul.f32 %v541, %v660
        %v670 = vmul.f32 %v570, %v661
        %v671 = vadd.f32 %v669, %v670
        %v672 = vsel %vm665, %v671, %v541
        %674 = vrot.lane.b32.xlu0 %v660, 8
        %v675 = vpop.permute.xlu0 %674
        %v677 = vmul.f32 %v541, %v675
        %679 = vrot.lane.b32.xlu0 %v661, 4
        %v680 = vpop.permute.xlu0 %679
        %v682 = vmul.f32 %v570, %v680
        %684 = vrot.lane.b32.xlu0 %v682, 4
        %v685 = vpop.permute.xlu0 %684
        %v687 = vadd.f32 %v677, %v685
        %689 = vrot.lane.b32.xlu0 %v687, 120
        %v690 = vpop.permute.xlu0 %689
        %693 = vrot.lane.b32.xlu0 %v541, 120
        %v694 = vpop.permute.xlu0 %693
        %v696 = vsel %vm665, %v690, %v694
        %v697 = vpack.c.bf16 %v696, %v672
        %vm698 = vcmask 64512
        %v700 = vsel %vm698, %v697, 0
        %v703 = vsel %vm698, %v667, 0
        %705 = vmatpush.bf16.xpose.msra.mxu0 0
        %706 = vmatpush.bf16.xpose.msra.mxu0 0
        %707 = vmatpush.bf16.xpose.msra.mxu0 0
        %708 = vmatpush.bf16.xpose.msra.mxu0 0
        %709 = vmatpush.bf16.xpose.msra.mxu0 0
        %710 = vmatpush.bf16.xpose.msra.mxu0 0
        %711 = vmatpush.bf16.xpose.msra.mxu0 0
        %712 = vmatpush.bf16.xpose.msra.mxu0 %v703
        %713 = vmatmul.bf16.gmra.mxu0 %v700
        %v714 = vpop.f32.mrf.mxu0
        %v715 = vadd.f32 0.0, %v714
        %v716 = vpop.f32.mrf.mxu0
        %v717 = vadd.f32 0.0, %v716
        %718 = vdwg.mxu0
        %v719 = vmul.f32 %v715, 0.35355338
        %v720 = vmul.f32 %v717, 0.35355338
        %v721 = vsel %vm698, %v719, -inf
        %722 = vmax.xlane.f32.xlu0 %v721
        %v723 = vpop.xlane.xlu0 %722
        %v724 = vsel %vm698, %v720, -inf
        %725 = vmax.xlane.f32.xlu0 %v724
        %v726 = vpop.xlane.xlu0 %725
        %v727 = vsub.f32 %v719, %v723
        %v728 = vsub.f32 %v720, %v726
        %v729 = vmul.f32 %v727, 1.442695
        %v730 = vpow.pop %v729
        %v731 = vmul.f32 %v728, 1.442695
        %v732 = vpow.pop %v731
        %v733 = vsel %vm698, %v730, 0.0
        %734 = vadd.xlane.f32.xlu0 %v733
        %v735 = vpop.xlane.xlu0 %734
        %v736 = vsel %vm698, %v732, 0.0
        %737 = vadd.xlane.f32.xlu0 %v736
        %v738 = vpop.xlane.xlu0 %737
        %v739 = vrcp.pop %v735
        %v740 = vmul.f32 %v735, %v739
        %v741 = vsub.f32 1.0, %v740
        %v742 = vmul.f32 %v739, %v741
        %v743 = vadd.f32 %v739, %v742
        %vm744 = vweird.f32 %v735
        %vm745 = vweird.f32 %v739
        %vm746 = vmor %vm744, %vm745
        %v747 = vsel %vm746, %v739, %v743
        %v748 = vand.u32 2147483647, %v735
        %vm749 = vcmp.eq.f32.partialorder %v748, 8.507059e+37
        %v750 = vand.u32 %v735, 2147483648
        %v751 = vor.u32 1.1754944e-38, %v750
        %v752 = vsel %vm749, %v751, %v747
        %v753 = vmul.f32 %v730, %v752
        %v754 = vrcp.pop %v738
        %v755 = vmul.f32 %v738, %v754
        %v756 = vsub.f32 1.0, %v755
        %v757 = vmul.f32 %v754, %v756
        %v758 = vadd.f32 %v754, %v757
        %vm759 = vweird.f32 %v738
        %vm760 = vweird.f32 %v754
        %vm761 = vmor %vm759, %vm760
        %v762 = vsel %vm761, %v754, %v758
        %v763 = vand.u32 2147483647, %v738
        %vm764 = vcmp.eq.f32.partialorder %v763, 8.507059e+37
        %v765 = vand.u32 %v738, 2147483648
        %v766 = vor.u32 1.1754944e-38, %v765
        %v767 = vsel %vm764, %v766, %v762
        %v768 = vmul.f32 %v732, %v767
        %v769 = vpack.c.bf16 %v768, %v753
        %v771 = vsel %vm698, %v769, 0
        %vm773 = vcmask 1043456
        %v775 = vsel %vm773, %v668, 0
        %777 = vmatpush.bf16.msra.mxu0 0
        %778 = vmatpush.bf16.msra.mxu0 0
        %779 = vmatpush.bf16.msra.mxu0 0
        %780 = vmatpush.bf16.msra.mxu0 0
        %781 = vmatpush.bf16.msra.mxu0 0
        %782 = vmatpush.bf16.msra.mxu0 0
        %783 = vmatpush.bf16.msra.mxu0 0
        %784 = vmatpush.bf16.msra.mxu0 %v775
        %785 = vmatmul.bf16.gmra.mxu0 %v771
        %v786 = vpop.f32.mrf.mxu0
        %v787 = vadd.f32 0.0, %v786
        %v788 = vpop.f32.mrf.mxu0
        %v789 = vadd.f32 0.0, %v788
        %790 = vdwg.mxu0
        %v791 = vmul.f32 %v599, %v675
        %v792 = vmul.f32 %v628, %v680
        %794 = vrot.lane.b32.xlu0 %v792, 4
        %v795 = vpop.permute.xlu0 %794
        %v797 = vadd.f32 %v791, %v795
        %799 = vrot.lane.b32.xlu0 %v797, 120
        %v800 = vpop.permute.xlu0 %799
        %803 = vrot.lane.b32.xlu0 %v599, 120
        %v804 = vpop.permute.xlu0 %803
        %v806 = vsel %vm665, %v800, %v804
        %v807 = vpack.c.bf16 %v806, %v806
        %808 = vrot.lane.b32.xlu0 %v660, 16
        %v809 = vpop.permute.xlu0 %808
        %v811 = vmul.f32 %v541, %v809
        %812 = vrot.lane.b32.xlu0 %v661, 8
        %v813 = vpop.permute.xlu0 %812
        %v815 = vmul.f32 %v570, %v813
        %817 = vrot.lane.b32.xlu0 %v815, 8
        %v818 = vpop.permute.xlu0 %817
        %v820 = vadd.f32 %v811, %v818
        %822 = vrot.lane.b32.xlu0 %v820, 112
        %v823 = vpop.permute.xlu0 %822
        %825 = vrot.lane.b32.xlu0 %v541, 112
        %v826 = vpop.permute.xlu0 %825
        %v828 = vsel %vm665, %v823, %v826
        %829 = vrot.lane.b32.xlu0 %v660, 24
        %v830 = vpop.permute.xlu0 %829
        %v832 = vmul.f32 %v541, %v830
        %833 = vrot.lane.b32.xlu0 %v661, 12
        %v834 = vpop.permute.xlu0 %833
        %v836 = vmul.f32 %v570, %v834
        %838 = vrot.lane.b32.xlu0 %v836, 12
        %v839 = vpop.permute.xlu0 %838
        %v841 = vadd.f32 %v832, %v839
        %843 = vrot.lane.b32.xlu0 %v841, 104
        %v844 = vpop.permute.xlu0 %843
        %846 = vrot.lane.b32.xlu0 %v541, 104
        %v847 = vpop.permute.xlu0 %846
        %v849 = vsel %vm665, %v844, %v847
        %v850 = vpack.c.bf16 %v849, %v828
        %v852 = vsel %vm698, %v850, 0
        %v855 = vsel %vm698, %v807, 0
        %857 = vmatpush.bf16.xpose.msra.mxu0 0
        %858 = vmatpush.bf16.xpose.msra.mxu0 0
        %859 = vmatpush.bf16.xpose.msra.mxu0 0
        %860 = vmatpush.bf16.xpose.msra.mxu0 0
        %861 = vmatpush.bf16.xpose.msra.mxu0 0
        %862 = vmatpush.bf16.xpose.msra.mxu0 0
        %863 = vmatpush.bf16.xpose.msra.mxu0 0
        %864 = vmatpush.bf16.xpose.msra.mxu0 %v855
        %865 = vmatmul.bf16.gmra.mxu0 %v852
        %v866 = vpop.f32.mrf.mxu0
        %v867 = vadd.f32 0.0, %v866
        %v868 = vpop.f32.mrf.mxu0
        %v869 = vadd.f32 0.0, %v868
        %870 = vdwg.mxu0
        %v871 = vmul.f32 %v867, 0.35355338
        %v872 = vmul.f32 %v869, 0.35355338
        %v873 = vsel %vm698, %v871, -inf
        %874 = vmax.xlane.f32.xlu0 %v873
        %v875 = vpop.xlane.xlu0 %874
        %v876 = vsel %vm698, %v872, -inf
        %877 = vmax.xlane.f32.xlu0 %v876
        %v878 = vpop.xlane.xlu0 %877
        %v879 = vsub.f32 %v871, %v875
        %v880 = vsub.f32 %v872, %v878
        %v881 = vmul.f32 %v879, 1.442695
        %v882 = vpow.pop %v881
        %v883 = vmul.f32 %v880, 1.442695
        %v884 = vpow.pop %v883
        %v885 = vsel %vm698, %v882, 0.0
        %886 = vadd.xlane.f32.xlu0 %v885
        %v887 = vpop.xlane.xlu0 %886
        %v888 = vsel %vm698, %v884, 0.0
        %889 = vadd.xlane.f32.xlu0 %v888
        %v890 = vpop.xlane.xlu0 %889
        %v891 = vrcp.pop %v887
        %v892 = vmul.f32 %v887, %v891
        %v893 = vsub.f32 1.0, %v892
        %v894 = vmul.f32 %v891, %v893
        %v895 = vadd.f32 %v891, %v894
        %vm896 = vweird.f32 %v887
        %vm897 = vweird.f32 %v891
        %vm898 = vmor %vm896, %vm897
        %v899 = vsel %vm898, %v891, %v895
        %v900 = vand.u32 2147483647, %v887
        %vm901 = vcmp.eq.f32.partialorder %v900, 8.507059e+37
        %v902 = vand.u32 %v887, 2147483648
        %v903 = vor.u32 1.1754944e-38, %v902
        %v904 = vsel %vm901, %v903, %v899
        %v905 = vmul.f32 %v882, %v904
        %v906 = vrcp.pop %v890
        %v907 = vmul.f32 %v890, %v906
        %v908 = vsub.f32 1.0, %v907
        %v909 = vmul.f32 %v906, %v908
        %v910 = vadd.f32 %v906, %v909
        %vm911 = vweird.f32 %v890
        %vm912 = vweird.f32 %v906
        %vm913 = vmor %vm911, %vm912
        %v914 = vsel %vm913, %v906, %v910
        %v915 = vand.u32 2147483647, %v890
        %vm916 = vcmp.eq.f32.partialorder %v915, 8.507059e+37
        %v917 = vand.u32 %v890, 2147483648
        %v918 = vor.u32 1.1754944e-38, %v917
        %v919 = vsel %vm916, %v918, %v914
        %v920 = vmul.f32 %v884, %v919
        %v921 = vpack.c.bf16 %v920, %v905
        %923 = vrot.lane.b32.xlu0 %v668, 120
        %v924 = vpop.permute.xlu0 %923
        %v926 = vsel %vm698, %v921, 0
        %v929 = vsel %vm773, %v924, 0
        %931 = vmatpush.bf16.msra.mxu0 0
        %932 = vmatpush.bf16.msra.mxu0 0
        %933 = vmatpush.bf16.msra.mxu0 0
        %934 = vmatpush.bf16.msra.mxu0 0
        %935 = vmatpush.bf16.msra.mxu0 0
        %936 = vmatpush.bf16.msra.mxu0 0
        %937 = vmatpush.bf16.msra.mxu0 0
        %938 = vmatpush.bf16.msra.mxu0 %v929
        %939 = vmatmul.bf16.gmra.mxu0 %v926
        %v940 = vpop.f32.mrf.mxu0
        %v941 = vadd.f32 0.0, %v940
        %v942 = vpop.f32.mrf.mxu0
        %v943 = vadd.f32 0.0, %v942
        %944 = vdwg.mxu0
        %946 = vrot.lane.b32.xlu0 %v789, 8
        %v947 = vpop.permute.xlu0 %946
        %950 = vrot.lane.b32.xlu0 %v941, 16
        %v951 = vpop.permute.xlu0 %950
        %954 = vrot.lane.b32.xlu0 %v943, 24
        %v955 = vpop.permute.xlu0 %954
        %v957 = vsel %vm698, %v787, %v947
        %vm958 = vcmask 130048
        %v959 = vsel %vm958, %v957, %v951
        %vm960 = vcmask 195584
        %v961 = vsel %vm960, %v959, %v955
        %v962 = vpack.c.bf16 %v961, %v961
        %v963 = vld [vmem:[%s8] sm:$0xf]
        %v964 = vld [vmem:[%s8 + $0x4] sm:$0xf]
        %v965 = vld [vmem:[%s8 + $0x8] sm:$0xf]
        %v966 = vld [vmem:[%s8 + $0xc] sm:$0xf]
        %v971 = vunpack.c.l.b16 %v963
        %v972 = vunpack.c.l.b16 %v964
        %v973 = vunpack.c.l.b16 %v965
        %v974 = vunpack.c.l.b16 %v966
        %v975 = vpack.c.b16 %v972, %v971
        %v976 = vpack.c.b16 %v974, %v973
        %v980 = vsel %vm467, %v962, 0
        %982 = vmatpush.bf16.msra.mxu0 0
        %983 = vmatpush.bf16.msra.mxu0 0
        %984 = vmatpush.bf16.msra.mxu0 0
        %985 = vmatpush.bf16.msra.mxu0 0
        %986 = vmatpush.bf16.msra.mxu0 0
        %987 = vmatpush.bf16.msra.mxu0 0
        %988 = vmatpush.bf16.msra.mxu0 %v976
        %989 = vmatpush.bf16.msra.mxu0 %v975
        %990 = vmatmul.bf16.gmra.mxu0 %v980
        %v991 = vpop.f32.mrf.mxu0
        %v992 = vadd.f32 0.0, %v991
        %v993 = vpop.f32.mrf.mxu0
        %994 = vdwg.mxu0
        %v995 = vadd.f32 %v464, %v992
        %v996 = vld [vmem:[%s2] sm:$0x1]
        %v997 = vmul.f32 %v995, %v995
        %v998 = vsel %vm467, %v997, 0.0
        %999 = vadd.xlane.f32.xlu0 %v998
        %v1000 = vpop.xlane.xlu0 %999
        %v1001 = vmul.f32 %v1000, %v477
        %v1002 = vadd.f32 %v1001, 1e-06
        %v1003 = vrsqrt.pop %v1002
        %v1004 = vmul.f32 %v1003, %v1002
        %v1005 = vmul.f32 %v1004, %v1003
        %v1006 = vmul.f32 0.5, %v1005
        %v1007 = vsub.f32 1.5, %v1006
        %v1008 = vmul.f32 %v1003, %v1007
        %v1009 = vmul.f32 %v1002, %v1008
        %vm1010 = vcmp.eq.f32.partialorder %v1002, inf
        %v1011 = vsel %vm1010, %v1002, %v1009
        %vm1012 = vcmp.eq.f32.partialorder %v1002, 0.0
        %v1013 = vand.u32 %v1002, 2147483648
        %v1014 = vsel %vm1012, %v1013, %v1011
        %v1015 = vrcp.pop %v1014
        %v1016 = vmul.f32 %v1014, %v1015
        %v1017 = vsub.f32 1.0, %v1016
        %v1018 = vmul.f32 %v1015, %v1017
        %v1019 = vadd.f32 %v1015, %v1018
        %vm1020 = vweird.f32 %v1014
        %vm1021 = vweird.f32 %v1015
        %vm1022 = vmor %vm1020, %vm1021
        %v1023 = vsel %vm1022, %v1015, %v1019
        %v1024 = vand.u32 2147483647, %v1014
        %vm1025 = vcmp.eq.f32.partialorder %v1024, 8.507059e+37
        %v1026 = vand.u32 %v1014, 2147483648
        %v1027 = vor.u32 1.1754944e-38, %v1026
        %v1028 = vsel %vm1025, %v1027, %v1023
        %v1029 = vmul.f32 %v995, %v1028
        %v1031 = vperm.slane %v996, 0
        %v1033 = vmul.f32 %v1031, %v1029
        %v1034 = vpack.c.bf16 %v1033, %v1033
        %v1035 = vld [vmem:[%s9] sm:$0xf]
        %v1036 = vld [vmem:[%s9 + $0x4] sm:$0xf]
        %v1037 = vld [vmem:[%s9 + $0x8] sm:$0xf]
        %v1038 = vld [vmem:[%s9 + $0xc] sm:$0xf]
        %v1043 = vunpack.c.l.b16 %v1035
        %v1044 = vunpack.c.l.b16 %v1036
        %v1045 = vunpack.c.l.b16 %v1037
        %v1046 = vunpack.c.l.b16 %v1038
        %v1047 = vpack.c.b16 %v1044, %v1043
        %v1048 = vpack.c.b16 %v1046, %v1045
        %v1052 = vsel %vm467, %v1034, 0
        %1054 = vmatpush.bf16.msra.mxu0 0
        %1055 = vmatpush.bf16.msra.mxu0 0
        %1056 = vmatpush.bf16.msra.mxu0 0
        %1057 = vmatpush.bf16.msra.mxu0 0
        %1058 = vmatpush.bf16.msra.mxu0 0
        %1059 = vmatpush.bf16.msra.mxu0 0
        %1060 = vmatpush.bf16.msra.mxu0 %v1048
        %1061 = vmatpush.bf16.msra.mxu0 %v1047
        %1062 = vmatmul.bf16.gmra.mxu0 %v1052
        %v1063 = vpop.f32.mrf.mxu0
        %v1064 = vadd.f32 0.0, %v1063
        %v1065 = vpop.f32.mrf.mxu0
        %1066 = vdwg.mxu0
        %v1067 = vld [vmem:[%s10] sm:$0xf]
        %v1068 = vld [vmem:[%s10 + $0x4] sm:$0xf]
        %v1069 = vld [vmem:[%s10 + $0x8] sm:$0xf]
        %v1070 = vld [vmem:[%s10 + $0xc] sm:$0xf]
        %v1075 = vunpack.c.l.b16 %v1067
        %v1076 = vunpack.c.l.b16 %v1068
        %v1077 = vunpack.c.l.b16 %v1069
        %v1078 = vunpack.c.l.b16 %v1070
        %v1079 = vpack.c.b16 %v1076, %v1075
        %v1080 = vpack.c.b16 %v1078, %v1077
        %1083 = vmatpush.bf16.msra.mxu0 0
        %1084 = vmatpush.bf16.msra.mxu0 0
        %1085 = vmatpush.bf16.msra.mxu0 0
        %1086 = vmatpush.bf16.msra.mxu0 0
        %1087 = vmatpush.bf16.msra.mxu0 0
        %1088 = vmatpush.bf16.msra.mxu0 0
        %1089 = vmatpush.bf16.msra.mxu0 %v1080
        %1090 = vmatpush.bf16.msra.mxu0 %v1079
        %1091 = vmatmul.bf16.gmra.mxu0 %v1052
        %v1092 = vpop.f32.mrf.mxu0
        %v1093 = vadd.f32 0.0, %v1092
        %v1094 = vpop.f32.mrf.mxu0
        %1095 = vdwg.mxu0
        %v1096 = vsub.f32 0.0, %v1064
        %v1097 = vmul.f32 %v1096, 1.442695
        %v1098 = vpow.pop %v1097
        %v1099 = vadd.f32 %v1098, 1.0
        %v1100 = vrcp.pop %v1099
        %v1101 = vmul.f32 %v1099, %v1100
        %v1102 = vsub.f32 1.0, %v1101
        %v1103 = vmul.f32 %v1100, %v1102
        %v1104 = vadd.f32 %v1100, %v1103
        %vm1105 = vweird.f32 %v1099
        %vm1106 = vweird.f32 %v1100
        %vm1107 = vmor %vm1105, %vm1106
        %v1108 = vsel %vm1107, %v1100, %v1104
        %v1109 = vand.u32 2147483647, %v1099
        %vm1110 = vcmp.eq.f32.partialorder %v1109, 8.507059e+37
        %v1111 = vand.u32 %v1099, 2147483648
        %v1112 = vor.u32 1.1754944e-38, %v1111
        %v1113 = vsel %vm1110, %v1112, %v1108
        %v1114 = vmul.f32 %v1064, %v1113
        %v1115 = vmul.f32 %v1114, %v1093
        %v1116 = vpack.c.bf16 %v1115, %v1115
        %v1117 = vld [vmem:[%s11] sm:$0xf]
        %v1118 = vld [vmem:[%s11 + $0x4] sm:$0xf]
        %v1119 = vld [vmem:[%s11 + $0x8] sm:$0xf]
        %v1120 = vld [vmem:[%s11 + $0xc] sm:$0xf]
        %v1121 = vld [vmem:[%s11 + $0x10] sm:$0xf]
        %v1122 = vld [vmem:[%s11 + $0x14] sm:$0xf]
        %v1123 = vld [vmem:[%s11 + $0x18] sm:$0xf]
        %v1124 = vld [vmem:[%s11 + $0x1c] sm:$0xf]
        %v1133 = vunpack.c.l.b16 %v1117
        %v1134 = vunpack.c.l.b16 %v1118
        %v1135 = vunpack.c.l.b16 %v1119
        %v1136 = vunpack.c.l.b16 %v1120
        %v1137 = vunpack.c.l.b16 %v1121
        %v1138 = vunpack.c.l.b16 %v1122
        %v1139 = vunpack.c.l.b16 %v1123
        %v1140 = vunpack.c.l.b16 %v1124
        %v1141 = vpack.c.b16 %v1134, %v1133
        %v1142 = vpack.c.b16 %v1136, %v1135
        %v1143 = vpack.c.b16 %v1138, %v1137
        %v1144 = vpack.c.b16 %v1140, %v1139
        %vm1149 = vcmask 523264
        %v1151 = vsel %vm1149, %v1116, 0
        %1153 = vmatpush.bf16.msra.mxu0 0
        %1154 = vmatpush.bf16.msra.mxu0 0
        %1155 = vmatpush.bf16.msra.mxu0 0
        %1156 = vmatpush.bf16.msra.mxu0 0
        %1157 = vmatpush.bf16.msra.mxu0 %v1144
        %1158 = vmatpush.bf16.msra.mxu0 %v1143
        %1159 = vmatpush.bf16.msra.mxu0 %v1142
        %1160 = vmatpush.bf16.msra.mxu0 %v1141
        %1161 = vmatmul.bf16.gmra.mxu0 %v1151
        %v1162 = vpop.f32.mrf.mxu0
        %v1163 = vadd.f32 0.0, %v1162
        %v1164 = vpop.f32.mrf.mxu0
        %1165 = vdwg.mxu0
        %v1166 = vadd.f32 %v995, %v1163
        %1167 = vst.msk [vmem:[%s458] sm:$0xff] %vm467, %v1166
        %s1168 = sand.u32 %s335, 1
        %s1169 = scalar_lea.sflag [#allocation3], %s1168
        %s1170 = sand.u32 %s335, 1
        %s1171 = smul.addr %s1170, 8
        %s1172 = scalar_lea.vmem [#allocation2], %s1171
        // Predicated region
        $region77: #{tpu_custom_call.1} parent=75 // pred_check
          %p1173 = pneg %p345
        $region78: #{tpu_custom_call.1} parent=75 // pred_check_branch
          %1175 = sbr.rel (%p1173) target = $region80
        $region79: #{tpu_custom_call.1} parent=75 // pred_region
          %1177 = vsyncadd %s1169, 0
          %s1178 = smul.addr %s28, 8
          %s1179 = scalar_lea.hbm %s14, %s1178
          %s1181 = sshll.u32 %s1172, 4
          %s1182 = int_to_ptr.vmem [resolvable:$true] %s1181
          %s1183 = sshll.u32 %s1179, 4
          %s1184 = int_to_ptr.hbm [resolvable:$true] %s1183
          %1186 = dma.vmem_to_hbm [thread:$0]  %s1182, 128, %s1184, %s1169
        $region80: #{tpu_custom_call.1} parent=75 // pred_fallthru
          _
      $region76: #{tpu_custom_call.1} parent=5 // pred_fallthru
        _
      %p1187 = scmp.le.s32.totalorder 2, %s23
      // Predicated region
      $region81: #{tpu_custom_call.1} parent=5 // pred_check
        %p1188 = pneg %p1187
      $region82: #{tpu_custom_call.1} parent=5 // pred_check_branch
        %1190 = sbr.rel (%p1188) target = $region84
      $region83: #{tpu_custom_call.1} parent=5 // pred_region
        %s1191 = ssub.s32 %s23, 2
        // Predicated region
        $region85: #{tpu_custom_call.1} parent=83 // pred_check
          %p1192 = pneg %p351
        $region86: #{tpu_custom_call.1} parent=83 // pred_check_branch
          %1194 = sbr.rel (%p1192) target = $region88
        $region87: #{tpu_custom_call.1} parent=83 // pred_region
          %s1195 = sand.u32 %s336, 1
          %s1196 = scalar_lea.sflag [#allocation3], %s1195
          %s1197 = sand.u32 %s336, 1
          %s1198 = smul.addr %s1197, 8
          %s1199 = scalar_lea.vmem [#allocation2], %s1198
          %1201 = dma.done %s1196, 128
        $region88: #{tpu_custom_call.1} parent=83 // pred_fallthru
          _
      $region84: #{tpu_custom_call.1} parent=5 // pred_fallthru
        _
    $region6: #{tpu_custom_call.1} parent=1 // loop_footer
      %s27 = sadd.s32 1, %s23
    $region7: #{tpu_custom_call.1} parent=1 // loop_footer_branch
      %22 = sbr.rel target = $region3
    $region8: #{tpu_custom_call.1} parent=1 // loop_exit
      _
    %1202 = vsyncpa [#allocation3], 1
    %s1203 = scalar_lea.sflag [#allocation3], 1
    %1204 = vsyncpa %s1203, 1

</llo_original>
